<compile_context>
chip_gen: v7x
topology: tpu7x:2x2x1
jax: 0.10.0
libtpu: 0.0.40
codegen_flags: <defaults>
</compile_context>

<pallas_src>
import functools

import jax
import jax.numpy as jnp
import numpy as np
from jax.experimental import pallas as pl
from jax.experimental.pallas import tpu as pltpu

KSIZE = 7
PAD = KSIZE // 2  # 3


def _spatial_attention_kernel(w_ref, row_ref, col_ref, x_ref, o_ref, *, H, W):
    """One batch tile (TB batch elements) per grid step.

    w_ref   : SMEM (2*K*K,) f32   flattened conv weight; avg-channel half is
                                  pre-scaled by 1/C (mean folded into weights)
    row_ref : VMEM (1, H*W) i32   row index of each flattened spatial position
    col_ref : VMEM (1, H*W) i32   col index of each flattened spatial position
    x_ref   : VMEM (TB, C, H*W)   input tile
    o_ref   : VMEM (TB, 1, H*W)   output tile
    """
    TB, C = x_ref.shape[0], x_ref.shape[1]
    HW = H * W

    # Channel reductions in a single pass over per-channel slices (keeps only
    # the two running planes live instead of the whole (TB, C, HW) block).
    # The 1/C of the mean is folded into the conv weights -> plain sum here.
    x0 = x_ref[:, 0, :].astype(jnp.float32)                  # (TB, HW)
    s_parts, m_parts = [x0], [x0]
    if C > 1:
        x1 = x_ref[:, 1, :].astype(jnp.float32)
        s_parts.append(x1)
        m_parts.append(x1)
    for c in range(2, C):                                     # 2-way ILP
        xc = x_ref[:, c, :].astype(jnp.float32)
        k = c & 1
        s_parts[k] = s_parts[k] + xc
        m_parts[k] = jnp.maximum(m_parts[k], xc)
    s = s_parts[0] if C == 1 else s_parts[0] + s_parts[1]     # "avg" plane (unscaled)
    m = m_parts[0] if C == 1 else jnp.maximum(m_parts[0], m_parts[1])  # "max" plane

    # Flattened spatial coordinates, broadcast once (hoisted out of the loop
    # so the 49 masked selects below need no per-tap broadcast_in_dim).
    row = jnp.broadcast_to(row_ref[...], (TB, HW))
    col = jnp.broadcast_to(col_ref[...], (TB, HW))

    # Per-offset validity masks for the zero padding (None == always valid).
    row_ok, col_ok = [], []
    for dy in range(KSIZE):
        oy = dy - PAD
        if oy < 0:
            row_ok.append(row >= -oy)
        elif oy > 0:
            row_ok.append(row < H - oy)
        else:
            row_ok.append(None)
    for dx in range(KSIZE):
        ox = dx - PAD
        if ox < 0:
            col_ok.append(col >= -ox)
        elif ox > 0:
            col_ok.append(col < W - ox)
        else:
            col_ok.append(None)

    def _and(a, b):
        if a is None:
            return b
        if b is None:
            return a
        return jnp.logical_and(a, b)

    # 7x7 cross-correlation over the 2-channel [avg, max] map, fully unrolled.
    # Each tap: one lane roll per plane (XLU slot), 2 scalar MACs + 1 masked
    # select (VPU).  Four partial accumulators break the dependency chain.
    # Masking on row/col validity also kills any circular-roll wrap-around.
    partials = [None, None, None, None]
    for dy in range(KSIZE):
        oy = dy - PAD
        row_acc = None
        for dx in range(KSIZE):
            ox = dx - PAD
            d = oy * W + ox                       # flattened source offset
            sh = (-d) % HW                        # out[p] = plane[p + d]
            rs = s if sh == 0 else pltpu.roll(s, shift=sh, axis=1)
            rm = m if sh == 0 else pltpu.roll(m, shift=sh, axis=1)
            w_avg = w_ref[dy * KSIZE + dx]
            w_max = w_ref[KSIZE * KSIZE + dy * KSIZE + dx]
            term = rs * w_avg + rm * w_max
            mask = _and(row_ok[dy], col_ok[dx])
            if mask is not None:
                term = jnp.where(mask, term, 0.0)
            row_acc = term if row_acc is None else row_acc + term
        k = dy % 4
        partials[k] = row_acc if partials[k] is None else partials[k] + row_acc

    acc = (partials[0] + partials[1]) + (partials[2] + partials[3])
    o_ref[:, 0, :] = jax.nn.sigmoid(acc).astype(o_ref.dtype)


def _pick_batch_tile(B, C, HW, itemsize, budget_bytes=4 << 20):
    """Largest divisor of B whose VMEM footprint fits the budget.

    Prefers multiples of 8 so the (TB, HW) planes fill vreg sublanes.
    Footprint per batch element: double-buffered input block + output block
    + the ~8 live f32 working planes inside the kernel.
    """
    per_elem = 2 * C * HW * itemsize + 2 * HW * 4 + 8 * HW * 4
    cap = max(1, budget_bytes // max(per_elem, 1))
    divisors = [d for d in range(1, B + 1) if B % d == 0 and d <= cap]
    if not divisors:
        divisors = [1]
    mult8 = [d for d in divisors if d % 8 == 0]
    return max(mult8) if mult8 else max(divisors)


@jax.jit
def spatial_attention(x, weight):
    """x: (B, C, H, W); weight: (1, 2, K, K) -> (B, 1, H, W) attention map."""
    B, C, H, W = x.shape
    HW = H * W

    # Fold the 1/C of the channel mean into the avg-channel weights; flatten.
    w = weight.astype(jnp.float32)
    w = w.at[:, 0].multiply(1.0 / C)
    w_flat = w.reshape(-1)                                    # (2*K*K,)

    # Flattened-spatial coordinate tables (tiny, same block every grid step).
    pos = np.arange(HW, dtype=np.int32)
    row_idx = jnp.asarray((pos // W).reshape(1, HW))
    col_idx = jnp.asarray((pos % W).reshape(1, HW))

    x_flat = x.reshape(B, C, HW)                              # contiguous: free
    TB = _pick_batch_tile(B, C, HW, x.dtype.itemsize)

    kernel = functools.partial(_spatial_attention_kernel, H=H, W=W)

    out = pl.pallas_call(
        kernel,
        out_shape=jax.ShapeDtypeStruct((B, 1, HW), x.dtype),
        grid_spec=pltpu.PrefetchScalarGridSpec(
            num_scalar_prefetch=0,
            grid=(B // TB,),
            in_specs=[
                # Conv weights: small, scalar-indexed -> SMEM, untiled.
                pl.BlockSpec(memory_space=pltpu.MemorySpace.SMEM),
                # Coordinate tables: same (tiny) block every step.
                pl.BlockSpec((1, HW), lambda b: (0, 0)),
                pl.BlockSpec((1, HW), lambda b: (0, 0)),
                # TB batch elements per grid step, lane-dense last dim.
                pl.BlockSpec((TB, C, HW), lambda b: (b, 0, 0)),
            ],
            out_specs=pl.BlockSpec((TB, 1, HW), lambda b: (b, 0, 0)),
        ),
        compiler_params=pltpu.CompilerParams(
            # Batch tiles are independent -> shard across TensorCores.
            dimension_semantics=("parallel",),
        ),
    )(w_flat, row_idx, col_idx, x_flat)

    return out.reshape(B, 1, H, W)


def _reference(x, weight):
    """Pure-JAX reference mirroring the PyTorch module."""
    avg = jnp.mean(x, axis=1, keepdims=True)
    mx = jnp.max(x, axis=1, keepdims=True)
    cat = jnp.concatenate([avg, mx], axis=1)
    y = jax.lax.conv_general_dilated(
        cat, weight, window_strides=(1, 1),
        padding=[(PAD, PAD), (PAD, PAD)],
        dimension_numbers=("NCHW", "OIHW", "NCHW"))
    return jax.nn.sigmoid(y)


if __name__ == "__main__":
    B, C, H, W = 2, 4, 16, 16
    key = jax.random.PRNGKey(0)
    kx, kw = jax.random.split(key)
    x = jax.random.normal(kx, (B, C, H, W), dtype=jnp.float32)
    weight = 0.1 * jax.random.normal(kw, (1, 2, KSIZE, KSIZE), dtype=jnp.float32)

    out = jax.block_until_ready(spatial_attention(x, weight))
    ref = jax.block_until_ready(_reference(x, weight))
    np.testing.assert_allclose(np.asarray(out), np.asarray(ref), rtol=1e-5, atol=1e-5)
    print("KERNEL_OK")
</pallas_src>

<mosaic_0001>
module attributes {stable_mosaic.version = 11 : i64} {
  func.func @_spatial_attention_kernel(%arg0: i32, %arg1: memref<98xf32, #tpu.memory_space<smem>>, %arg2: memref<1x256xi32, #tpu.memory_space<vmem>>, %arg3: memref<1x256xi32, #tpu.memory_space<vmem>>, %arg4: memref<2x4x256xf32, #tpu.memory_space<vmem>>, %arg5: memref<2x1x256xf32, #tpu.memory_space<vmem>>) attributes {dimension_semantics = [#tpu.dimension_semantics<parallel>], iteration_bounds = array<i64: 1>, scalar_prefetch = 0 : i64, scratch_operands = 0 : i64, tpu.core_type = #tpu.core_type<tc>, window_params = [{transform_indices = @transform_0, window_bounds = array<i64: 98>}, {pipeline_mode = #tpu.pipeline_mode<synchronous>, transform_indices = @transform_1, window_bounds = array<i64: 1, 256>}, {pipeline_mode = #tpu.pipeline_mode<synchronous>, transform_indices = @transform_2, window_bounds = array<i64: 1, 256>}, {transform_indices = @transform_3, window_bounds = array<i64: 2, 4, 256>}, {transform_indices = @transform_4, window_bounds = array<i64: 2, 1, 256>}]} {
    %c0 = arith.constant 0 : index
    %c0_0 = arith.constant 0 : index
    %c0_1 = arith.constant 0 : index
    %0 = vector.load %arg4[%c0, %c0_0, %c0_1] : memref<2x4x256xf32, #tpu.memory_space<vmem>>, vector<2x1x256xf32>
    %1 = vector.shape_cast %0 : vector<2x1x256xf32> to vector<2x256xf32>
    %c0_2 = arith.constant 0 : index
    %c1 = arith.constant 1 : index
    %c0_3 = arith.constant 0 : index
    %2 = vector.load %arg4[%c0_2, %c1, %c0_3] : memref<2x4x256xf32, #tpu.memory_space<vmem>>, vector<2x1x256xf32>
    %3 = vector.shape_cast %2 : vector<2x1x256xf32> to vector<2x256xf32>
    %c0_4 = arith.constant 0 : index
    %c2 = arith.constant 2 : index
    %c0_5 = arith.constant 0 : index
    %4 = vector.load %arg4[%c0_4, %c2, %c0_5] : memref<2x4x256xf32, #tpu.memory_space<vmem>>, vector<2x1x256xf32>
    %5 = vector.shape_cast %4 : vector<2x1x256xf32> to vector<2x256xf32>
    %6 = arith.addf %1, %5 : vector<2x256xf32>
    %7 = arith.maximumf %1, %5 : vector<2x256xf32>
    %c0_6 = arith.constant 0 : index
    %c3 = arith.constant 3 : index
    %c0_7 = arith.constant 0 : index
    %8 = vector.load %arg4[%c0_6, %c3, %c0_7] : memref<2x4x256xf32, #tpu.memory_space<vmem>>, vector<2x1x256xf32>
    %9 = vector.shape_cast %8 : vector<2x1x256xf32> to vector<2x256xf32>
    %10 = arith.addf %3, %9 : vector<2x256xf32>
    %11 = arith.maximumf %3, %9 : vector<2x256xf32>
    %12 = arith.addf %6, %10 : vector<2x256xf32>
    %13 = arith.maximumf %7, %11 : vector<2x256xf32>
    %c0_8 = arith.constant 0 : index
    %c0_9 = arith.constant 0 : index
    %14 = vector.load %arg2[%c0_8, %c0_9] : memref<1x256xi32, #tpu.memory_space<vmem>>, vector<1x256xi32>
    %15 = vector.shape_cast %14 : vector<1x256xi32> to vector<1x256xi32>
    %16 = vector.broadcast %15 : vector<1x256xi32> to vector<2x256xi32>
    %c0_10 = arith.constant 0 : index
    %c0_11 = arith.constant 0 : index
    %17 = vector.load %arg3[%c0_10, %c0_11] : memref<1x256xi32, #tpu.memory_space<vmem>>, vector<1x256xi32>
    %18 = vector.shape_cast %17 : vector<1x256xi32> to vector<1x256xi32>
    %19 = vector.broadcast %18 : vector<1x256xi32> to vector<2x256xi32>
    %c3_i32 = arith.constant 3 : i32
    %20 = vector.broadcast %c3_i32 : i32 to vector<2x256xi32>
    %21 = arith.cmpi sge, %16, %20 : vector<2x256xi32>
    %c2_i32 = arith.constant 2 : i32
    %22 = vector.broadcast %c2_i32 : i32 to vector<2x256xi32>
    %23 = arith.cmpi sge, %16, %22 : vector<2x256xi32>
    %c1_i32 = arith.constant 1 : i32
    %24 = vector.broadcast %c1_i32 : i32 to vector<2x256xi32>
    %25 = arith.cmpi sge, %16, %24 : vector<2x256xi32>
    %c15_i32 = arith.constant 15 : i32
    %26 = vector.broadcast %c15_i32 : i32 to vector<2x256xi32>
    %27 = arith.cmpi slt, %16, %26 : vector<2x256xi32>
    %c14_i32 = arith.constant 14 : i32
    %28 = vector.broadcast %c14_i32 : i32 to vector<2x256xi32>
    %29 = arith.cmpi slt, %16, %28 : vector<2x256xi32>
    %c13_i32 = arith.constant 13 : i32
    %30 = vector.broadcast %c13_i32 : i32 to vector<2x256xi32>
    %31 = arith.cmpi slt, %16, %30 : vector<2x256xi32>
    %c3_i32_12 = arith.constant 3 : i32
    %32 = vector.broadcast %c3_i32_12 : i32 to vector<2x256xi32>
    %33 = arith.cmpi sge, %19, %32 : vector<2x256xi32>
    %c2_i32_13 = arith.constant 2 : i32
    %34 = vector.broadcast %c2_i32_13 : i32 to vector<2x256xi32>
    %35 = arith.cmpi sge, %19, %34 : vector<2x256xi32>
    %c1_i32_14 = arith.constant 1 : i32
    %36 = vector.broadcast %c1_i32_14 : i32 to vector<2x256xi32>
    %37 = arith.cmpi sge, %19, %36 : vector<2x256xi32>
    %c15_i32_15 = arith.constant 15 : i32
    %38 = vector.broadcast %c15_i32_15 : i32 to vector<2x256xi32>
    %39 = arith.cmpi slt, %19, %38 : vector<2x256xi32>
    %c14_i32_16 = arith.constant 14 : i32
    %40 = vector.broadcast %c14_i32_16 : i32 to vector<2x256xi32>
    %41 = arith.cmpi slt, %19, %40 : vector<2x256xi32>
    %c13_i32_17 = arith.constant 13 : i32
    %42 = vector.broadcast %c13_i32_17 : i32 to vector<2x256xi32>
    %43 = arith.cmpi slt, %19, %42 : vector<2x256xi32>
    %c51_i32 = arith.constant 51 : i32
    %44 = tpu.dynamic_rotate %12 by %c51_i32 dim 1 : vector<2x256xf32>, i32 -> vector<2x256xf32>
    %c51_i32_18 = arith.constant 51 : i32
    %45 = tpu.dynamic_rotate %13 by %c51_i32_18 dim 1 : vector<2x256xf32>, i32 -> vector<2x256xf32>
    %c0_19 = arith.constant 0 : index
    %46 = memref.load %arg1[%c0_19] : memref<98xf32, #tpu.memory_space<smem>>
    %c49 = arith.constant 49 : index
    %47 = memref.load %arg1[%c49] : memref<98xf32, #tpu.memory_space<smem>>
    %48 = vector.broadcast %46 : f32 to vector<2x256xf32>
    %49 = arith.mulf %44, %48 : vector<2x256xf32>
    %50 = vector.broadcast %47 : f32 to vector<2x256xf32>
    %51 = arith.mulf %45, %50 : vector<2x256xf32>
    %52 = arith.addf %49, %51 : vector<2x256xf32>
    %53 = arith.andi %21, %33 : vector<2x256xi1>
    %cst = arith.constant 0.000000e+00 : f32
    %54 = vector.broadcast %cst : f32 to vector<2x256xf32>
    %55 = arith.select %53, %52, %54 : vector<2x256xi1>, vector<2x256xf32>
    %c50_i32 = arith.constant 50 : i32
    %56 = tpu.dynamic_rotate %12 by %c50_i32 dim 1 : vector<2x256xf32>, i32 -> vector<2x256xf32>
    %c50_i32_20 = arith.constant 50 : i32
    %57 = tpu.dynamic_rotate %13 by %c50_i32_20 dim 1 : vector<2x256xf32>, i32 -> vector<2x256xf32>
    %c1_21 = arith.constant 1 : index
    %58 = memref.load %arg1[%c1_21] : memref<98xf32, #tpu.memory_space<smem>>
    %c50 = arith.constant 50 : index
    %59 = memref.load %arg1[%c50] : memref<98xf32, #tpu.memory_space<smem>>
    %60 = vector.broadcast %58 : f32 to vector<2x256xf32>
    %61 = arith.mulf %56, %60 : vector<2x256xf32>
    %62 = vector.broadcast %59 : f32 to vector<2x256xf32>
    %63 = arith.mulf %57, %62 : vector<2x256xf32>
    %64 = arith.addf %61, %63 : vector<2x256xf32>
    %65 = arith.andi %21, %35 : vector<2x256xi1>
    %cst_22 = arith.constant 0.000000e+00 : f32
    %66 = vector.broadcast %cst_22 : f32 to vector<2x256xf32>
    %67 = arith.select %65, %64, %66 : vector<2x256xi1>, vector<2x256xf32>
    %68 = arith.addf %55, %67 : vector<2x256xf32>
    %c49_i32 = arith.constant 49 : i32
    %69 = tpu.dynamic_rotate %12 by %c49_i32 dim 1 : vector<2x256xf32>, i32 -> vector<2x256xf32>
    %c49_i32_23 = arith.constant 49 : i32
    %70 = tpu.dynamic_rotate %13 by %c49_i32_23 dim 1 : vector<2x256xf32>, i32 -> vector<2x256xf32>
    %c2_24 = arith.constant 2 : index
    %71 = memref.load %arg1[%c2_24] : memref<98xf32, #tpu.memory_space<smem>>
    %c51 = arith.constant 51 : index
    %72 = memref.load %arg1[%c51] : memref<98xf32, #tpu.memory_space<smem>>
    %73 = vector.broadcast %71 : f32 to vector<2x256xf32>
    %74 = arith.mulf %69, %73 : vector<2x256xf32>
    %75 = vector.broadcast %72 : f32 to vector<2x256xf32>
    %76 = arith.mulf %70, %75 : vector<2x256xf32>
    %77 = arith.addf %74, %76 : vector<2x256xf32>
    %78 = arith.andi %21, %37 : vector<2x256xi1>
    %cst_25 = arith.constant 0.000000e+00 : f32
    %79 = vector.broadcast %cst_25 : f32 to vector<2x256xf32>
    %80 = arith.select %78, %77, %79 : vector<2x256xi1>, vector<2x256xf32>
    %81 = arith.addf %68, %80 : vector<2x256xf32>
    %c48_i32 = arith.constant 48 : i32
    %82 = tpu.dynamic_rotate %12 by %c48_i32 dim 1 : vector<2x256xf32>, i32 -> vector<2x256xf32>
    %c48_i32_26 = arith.constant 48 : i32
    %83 = tpu.dynamic_rotate %13 by %c48_i32_26 dim 1 : vector<2x256xf32>, i32 -> vector<2x256xf32>
    %c3_27 = arith.constant 3 : index
    %84 = memref.load %arg1[%c3_27] : memref<98xf32, #tpu.memory_space<smem>>
    %c52 = arith.constant 52 : index
    %85 = memref.load %arg1[%c52] : memref<98xf32, #tpu.memory_space<smem>>
    %86 = vector.broadcast %84 : f32 to vector<2x256xf32>
    %87 = arith.mulf %82, %86 : vector<2x256xf32>
    %88 = vector.broadcast %85 : f32 to vector<2x256xf32>
    %89 = arith.mulf %83, %88 : vector<2x256xf32>
    %90 = arith.addf %87, %89 : vector<2x256xf32>
    %cst_28 = arith.constant 0.000000e+00 : f32
    %91 = vector.broadcast %cst_28 : f32 to vector<2x256xf32>
    %92 = arith.select %21, %90, %91 : vector<2x256xi1>, vector<2x256xf32>
    %93 = arith.addf %81, %92 : vector<2x256xf32>
    %c47_i32 = arith.constant 47 : i32
    %94 = tpu.dynamic_rotate %12 by %c47_i32 dim 1 : vector<2x256xf32>, i32 -> vector<2x256xf32>
    %c47_i32_29 = arith.constant 47 : i32
    %95 = tpu.dynamic_rotate %13 by %c47_i32_29 dim 1 : vector<2x256xf32>, i32 -> vector<2x256xf32>
    %c4 = arith.constant 4 : index
    %96 = memref.load %arg1[%c4] : memref<98xf32, #tpu.memory_space<smem>>
    %c53 = arith.constant 53 : index
    %97 = memref.load %arg1[%c53] : memref<98xf32, #tpu.memory_space<smem>>
    %98 = vector.broadcast %96 : f32 to vector<2x256xf32>
    %99 = arith.mulf %94, %98 : vector<2x256xf32>
    %100 = vector.broadcast %97 : f32 to vector<2x256xf32>
    %101 = arith.mulf %95, %100 : vector<2x256xf32>
    %102 = arith.addf %99, %101 : vector<2x256xf32>
    %103 = arith.andi %21, %39 : vector<2x256xi1>
    %cst_30 = arith.constant 0.000000e+00 : f32
    %104 = vector.broadcast %cst_30 : f32 to vector<2x256xf32>
    %105 = arith.select %103, %102, %104 : vector<2x256xi1>, vector<2x256xf32>
    %106 = arith.addf %93, %105 : vector<2x256xf32>
    %c46_i32 = arith.constant 46 : i32
    %107 = tpu.dynamic_rotate %12 by %c46_i32 dim 1 : vector<2x256xf32>, i32 -> vector<2x256xf32>
    %c46_i32_31 = arith.constant 46 : i32
    %108 = tpu.dynamic_rotate %13 by %c46_i32_31 dim 1 : vector<2x256xf32>, i32 -> vector<2x256xf32>
    %c5 = arith.constant 5 : index
    %109 = memref.load %arg1[%c5] : memref<98xf32, #tpu.memory_space<smem>>
    %c54 = arith.constant 54 : index
    %110 = memref.load %arg1[%c54] : memref<98xf32, #tpu.memory_space<smem>>
    %111 = vector.broadcast %109 : f32 to vector<2x256xf32>
    %112 = arith.mulf %107, %111 : vector<2x256xf32>
    %113 = vector.broadcast %110 : f32 to vector<2x256xf32>
    %114 = arith.mulf %108, %113 : vector<2x256xf32>
    %115 = arith.addf %112, %114 : vector<2x256xf32>
    %116 = arith.andi %21, %41 : vector<2x256xi1>
    %cst_32 = arith.constant 0.000000e+00 : f32
    %117 = vector.broadcast %cst_32 : f32 to vector<2x256xf32>
    %118 = arith.select %116, %115, %117 : vector<2x256xi1>, vector<2x256xf32>
    %119 = arith.addf %106, %118 : vector<2x256xf32>
    %c45_i32 = arith.constant 45 : i32
    %120 = tpu.dynamic_rotate %12 by %c45_i32 dim 1 : vector<2x256xf32>, i32 -> vector<2x256xf32>
    %c45_i32_33 = arith.constant 45 : i32
    %121 = tpu.dynamic_rotate %13 by %c45_i32_33 dim 1 : vector<2x256xf32>, i32 -> vector<2x256xf32>
    %c6 = arith.constant 6 : index
    %122 = memref.load %arg1[%c6] : memref<98xf32, #tpu.memory_space<smem>>
    %c55 = arith.constant 55 : index
    %123 = memref.load %arg1[%c55] : memref<98xf32, #tpu.memory_space<smem>>
    %124 = vector.broadcast %122 : f32 to vector<2x256xf32>
    %125 = arith.mulf %120, %124 : vector<2x256xf32>
    %126 = vector.broadcast %123 : f32 to vector<2x256xf32>
    %127 = arith.mulf %121, %126 : vector<2x256xf32>
    %128 = arith.addf %125, %127 : vector<2x256xf32>
    %129 = arith.andi %21, %43 : vector<2x256xi1>
    %cst_34 = arith.constant 0.000000e+00 : f32
    %130 = vector.broadcast %cst_34 : f32 to vector<2x256xf32>
    %131 = arith.select %129, %128, %130 : vector<2x256xi1>, vector<2x256xf32>
    %132 = arith.addf %119, %131 : vector<2x256xf32>
    %c35_i32 = arith.constant 35 : i32
    %133 = tpu.dynamic_rotate %12 by %c35_i32 dim 1 : vector<2x256xf32>, i32 -> vector<2x256xf32>
    %c35_i32_35 = arith.constant 35 : i32
    %134 = tpu.dynamic_rotate %13 by %c35_i32_35 dim 1 : vector<2x256xf32>, i32 -> vector<2x256xf32>
    %c7 = arith.constant 7 : index
    %135 = memref.load %arg1[%c7] : memref<98xf32, #tpu.memory_space<smem>>
    %c56 = arith.constant 56 : index
    %136 = memref.load %arg1[%c56] : memref<98xf32, #tpu.memory_space<smem>>
    %137 = vector.broadcast %135 : f32 to vector<2x256xf32>
    %138 = arith.mulf %133, %137 : vector<2x256xf32>
    %139 = vector.broadcast %136 : f32 to vector<2x256xf32>
    %140 = arith.mulf %134, %139 : vector<2x256xf32>
    %141 = arith.addf %138, %140 : vector<2x256xf32>
    %142 = arith.andi %23, %33 : vector<2x256xi1>
    %cst_36 = arith.constant 0.000000e+00 : f32
    %143 = vector.broadcast %cst_36 : f32 to vector<2x256xf32>
    %144 = arith.select %142, %141, %143 : vector<2x256xi1>, vector<2x256xf32>
    %c34_i32 = arith.constant 34 : i32
    %145 = tpu.dynamic_rotate %12 by %c34_i32 dim 1 : vector<2x256xf32>, i32 -> vector<2x256xf32>
    %c34_i32_37 = arith.constant 34 : i32
    %146 = tpu.dynamic_rotate %13 by %c34_i32_37 dim 1 : vector<2x256xf32>, i32 -> vector<2x256xf32>
    %c8 = arith.constant 8 : index
    %147 = memref.load %arg1[%c8] : memref<98xf32, #tpu.memory_space<smem>>
    %c57 = arith.constant 57 : index
    %148 = memref.load %arg1[%c57] : memref<98xf32, #tpu.memory_space<smem>>
    %149 = vector.broadcast %147 : f32 to vector<2x256xf32>
    %150 = arith.mulf %145, %149 : vector<2x256xf32>
    %151 = vector.broadcast %148 : f32 to vector<2x256xf32>
    %152 = arith.mulf %146, %151 : vector<2x256xf32>
    %153 = arith.addf %150, %152 : vector<2x256xf32>
    %154 = arith.andi %23, %35 : vector<2x256xi1>
    %cst_38 = arith.constant 0.000000e+00 : f32
    %155 = vector.broadcast %cst_38 : f32 to vector<2x256xf32>
    %156 = arith.select %154, %153, %155 : vector<2x256xi1>, vector<2x256xf32>
    %157 = arith.addf %144, %156 : vector<2x256xf32>
    %c33_i32 = arith.constant 33 : i32
    %158 = tpu.dynamic_rotate %12 by %c33_i32 dim 1 : vector<2x256xf32>, i32 -> vector<2x256xf32>
    %c33_i32_39 = arith.constant 33 : i32
    %159 = tpu.dynamic_rotate %13 by %c33_i32_39 dim 1 : vector<2x256xf32>, i32 -> vector<2x256xf32>
    %c9 = arith.constant 9 : index
    %160 = memref.load %arg1[%c9] : memref<98xf32, #tpu.memory_space<smem>>
    %c58 = arith.constant 58 : index
    %161 = memref.load %arg1[%c58] : memref<98xf32, #tpu.memory_space<smem>>
    %162 = vector.broadcast %160 : f32 to vector<2x256xf32>
    %163 = arith.mulf %158, %162 : vector<2x256xf32>
    %164 = vector.broadcast %161 : f32 to vector<2x256xf32>
    %165 = arith.mulf %159, %164 : vector<2x256xf32>
    %166 = arith.addf %163, %165 : vector<2x256xf32>
    %167 = arith.andi %23, %37 : vector<2x256xi1>
    %cst_40 = arith.constant 0.000000e+00 : f32
    %168 = vector.broadcast %cst_40 : f32 to vector<2x256xf32>
    %169 = arith.select %167, %166, %168 : vector<2x256xi1>, vector<2x256xf32>
    %170 = arith.addf %157, %169 : vector<2x256xf32>
    %c32_i32 = arith.constant 32 : i32
    %171 = tpu.dynamic_rotate %12 by %c32_i32 dim 1 : vector<2x256xf32>, i32 -> vector<2x256xf32>
    %c32_i32_41 = arith.constant 32 : i32
    %172 = tpu.dynamic_rotate %13 by %c32_i32_41 dim 1 : vector<2x256xf32>, i32 -> vector<2x256xf32>
    %c10 = arith.constant 10 : index
    %173 = memref.load %arg1[%c10] : memref<98xf32, #tpu.memory_space<smem>>
    %c59 = arith.constant 59 : index
    %174 = memref.load %arg1[%c59] : memref<98xf32, #tpu.memory_space<smem>>
    %175 = vector.broadcast %173 : f32 to vector<2x256xf32>
    %176 = arith.mulf %171, %175 : vector<2x256xf32>
    %177 = vector.broadcast %174 : f32 to vector<2x256xf32>
    %178 = arith.mulf %172, %177 : vector<2x256xf32>
    %179 = arith.addf %176, %178 : vector<2x256xf32>
    %cst_42 = arith.constant 0.000000e+00 : f32
    %180 = vector.broadcast %cst_42 : f32 to vector<2x256xf32>
    %181 = arith.select %23, %179, %180 : vector<2x256xi1>, vector<2x256xf32>
    %182 = arith.addf %170, %181 : vector<2x256xf32>
    %c31_i32 = arith.constant 31 : i32
    %183 = tpu.dynamic_rotate %12 by %c31_i32 dim 1 : vector<2x256xf32>, i32 -> vector<2x256xf32>
    %c31_i32_43 = arith.constant 31 : i32
    %184 = tpu.dynamic_rotate %13 by %c31_i32_43 dim 1 : vector<2x256xf32>, i32 -> vector<2x256xf32>
    %c11 = arith.constant 11 : index
    %185 = memref.load %arg1[%c11] : memref<98xf32, #tpu.memory_space<smem>>
    %c60 = arith.constant 60 : index
    %186 = memref.load %arg1[%c60] : memref<98xf32, #tpu.memory_space<smem>>
    %187 = vector.broadcast %185 : f32 to vector<2x256xf32>
    %188 = arith.mulf %183, %187 : vector<2x256xf32>
    %189 = vector.broadcast %186 : f32 to vector<2x256xf32>
    %190 = arith.mulf %184, %189 : vector<2x256xf32>
    %191 = arith.addf %188, %190 : vector<2x256xf32>
    %192 = arith.andi %23, %39 : vector<2x256xi1>
    %cst_44 = arith.constant 0.000000e+00 : f32
    %193 = vector.broadcast %cst_44 : f32 to vector<2x256xf32>
    %194 = arith.select %192, %191, %193 : vector<2x256xi1>, vector<2x256xf32>
    %195 = arith.addf %182, %194 : vector<2x256xf32>
    %c30_i32 = arith.constant 30 : i32
    %196 = tpu.dynamic_rotate %12 by %c30_i32 dim 1 : vector<2x256xf32>, i32 -> vector<2x256xf32>
    %c30_i32_45 = arith.constant 30 : i32
    %197 = tpu.dynamic_rotate %13 by %c30_i32_45 dim 1 : vector<2x256xf32>, i32 -> vector<2x256xf32>
    %c12 = arith.constant 12 : index
    %198 = memref.load %arg1[%c12] : memref<98xf32, #tpu.memory_space<smem>>
    %c61 = arith.constant 61 : index
    %199 = memref.load %arg1[%c61] : memref<98xf32, #tpu.memory_space<smem>>
    %200 = vector.broadcast %198 : f32 to vector<2x256xf32>
    %201 = arith.mulf %196, %200 : vector<2x256xf32>
    %202 = vector.broadcast %199 : f32 to vector<2x256xf32>
    %203 = arith.mulf %197, %202 : vector<2x256xf32>
    %204 = arith.addf %201, %203 : vector<2x256xf32>
    %205 = arith.andi %23, %41 : vector<2x256xi1>
    %cst_46 = arith.constant 0.000000e+00 : f32
    %206 = vector.broadcast %cst_46 : f32 to vector<2x256xf32>
    %207 = arith.select %205, %204, %206 : vector<2x256xi1>, vector<2x256xf32>
    %208 = arith.addf %195, %207 : vector<2x256xf32>
    %c29_i32 = arith.constant 29 : i32
    %209 = tpu.dynamic_rotate %12 by %c29_i32 dim 1 : vector<2x256xf32>, i32 -> vector<2x256xf32>
    %c29_i32_47 = arith.constant 29 : i32
    %210 = tpu.dynamic_rotate %13 by %c29_i32_47 dim 1 : vector<2x256xf32>, i32 -> vector<2x256xf32>
    %c13 = arith.constant 13 : index
    %211 = memref.load %arg1[%c13] : memref<98xf32, #tpu.memory_space<smem>>
    %c62 = arith.constant 62 : index
    %212 = memref.load %arg1[%c62] : memref<98xf32, #tpu.memory_space<smem>>
    %213 = vector.broadcast %211 : f32 to vector<2x256xf32>
    %214 = arith.mulf %209, %213 : vector<2x256xf32>
    %215 = vector.broadcast %212 : f32 to vector<2x256xf32>
    %216 = arith.mulf %210, %215 : vector<2x256xf32>
    %217 = arith.addf %214, %216 : vector<2x256xf32>
    %218 = arith.andi %23, %43 : vector<2x256xi1>
    %cst_48 = arith.constant 0.000000e+00 : f32
    %219 = vector.broadcast %cst_48 : f32 to vector<2x256xf32>
    %220 = arith.select %218, %217, %219 : vector<2x256xi1>, vector<2x256xf32>
    %221 = arith.addf %208, %220 : vector<2x256xf32>
    %c19_i32 = arith.constant 19 : i32
    %222 = tpu.dynamic_rotate %12 by %c19_i32 dim 1 : vector<2x256xf32>, i32 -> vector<2x256xf32>
    %c19_i32_49 = arith.constant 19 : i32
    %223 = tpu.dynamic_rotate %13 by %c19_i32_49 dim 1 : vector<2x256xf32>, i32 -> vector<2x256xf32>
    %c14 = arith.constant 14 : index
    %224 = memref.load %arg1[%c14] : memref<98xf32, #tpu.memory_space<smem>>
    %c63 = arith.constant 63 : index
    %225 = memref.load %arg1[%c63] : memref<98xf32, #tpu.memory_space<smem>>
    %226 = vector.broadcast %224 : f32 to vector<2x256xf32>
    %227 = arith.mulf %222, %226 : vector<2x256xf32>
    %228 = vector.broadcast %225 : f32 to vector<2x256xf32>
    %229 = arith.mulf %223, %228 : vector<2x256xf32>
    %230 = arith.addf %227, %229 : vector<2x256xf32>
    %231 = arith.andi %25, %33 : vector<2x256xi1>
    %cst_50 = arith.constant 0.000000e+00 : f32
    %232 = vector.broadcast %cst_50 : f32 to vector<2x256xf32>
    %233 = arith.select %231, %230, %232 : vector<2x256xi1>, vector<2x256xf32>
    %c18_i32 = arith.constant 18 : i32
    %234 = tpu.dynamic_rotate %12 by %c18_i32 dim 1 : vector<2x256xf32>, i32 -> vector<2x256xf32>
    %c18_i32_51 = arith.constant 18 : i32
    %235 = tpu.dynamic_rotate %13 by %c18_i32_51 dim 1 : vector<2x256xf32>, i32 -> vector<2x256xf32>
    %c15 = arith.constant 15 : index
    %236 = memref.load %arg1[%c15] : memref<98xf32, #tpu.memory_space<smem>>
    %c64 = arith.constant 64 : index
    %237 = memref.load %arg1[%c64] : memref<98xf32, #tpu.memory_space<smem>>
    %238 = vector.broadcast %236 : f32 to vector<2x256xf32>
    %239 = arith.mulf %234, %238 : vector<2x256xf32>
    %240 = vector.broadcast %237 : f32 to vector<2x256xf32>
    %241 = arith.mulf %235, %240 : vector<2x256xf32>
    %242 = arith.addf %239, %241 : vector<2x256xf32>
    %243 = arith.andi %25, %35 : vector<2x256xi1>
    %cst_52 = arith.constant 0.000000e+00 : f32
    %244 = vector.broadcast %cst_52 : f32 to vector<2x256xf32>
    %245 = arith.select %243, %242, %244 : vector<2x256xi1>, vector<2x256xf32>
    %246 = arith.addf %233, %245 : vector<2x256xf32>
    %c17_i32 = arith.constant 17 : i32
    %247 = tpu.dynamic_rotate %12 by %c17_i32 dim 1 : vector<2x256xf32>, i32 -> vector<2x256xf32>
    %c17_i32_53 = arith.constant 17 : i32
    %248 = tpu.dynamic_rotate %13 by %c17_i32_53 dim 1 : vector<2x256xf32>, i32 -> vector<2x256xf32>
    %c16 = arith.constant 16 : index
    %249 = memref.load %arg1[%c16] : memref<98xf32, #tpu.memory_space<smem>>
    %c65 = arith.constant 65 : index
    %250 = memref.load %arg1[%c65] : memref<98xf32, #tpu.memory_space<smem>>
    %251 = vector.broadcast %249 : f32 to vector<2x256xf32>
    %252 = arith.mulf %247, %251 : vector<2x256xf32>
    %253 = vector.broadcast %250 : f32 to vector<2x256xf32>
    %254 = arith.mulf %248, %253 : vector<2x256xf32>
    %255 = arith.addf %252, %254 : vector<2x256xf32>
    %256 = arith.andi %25, %37 : vector<2x256xi1>
    %cst_54 = arith.constant 0.000000e+00 : f32
    %257 = vector.broadcast %cst_54 : f32 to vector<2x256xf32>
    %258 = arith.select %256, %255, %257 : vector<2x256xi1>, vector<2x256xf32>
    %259 = arith.addf %246, %258 : vector<2x256xf32>
    %c16_i32 = arith.constant 16 : i32
    %260 = tpu.dynamic_rotate %12 by %c16_i32 dim 1 : vector<2x256xf32>, i32 -> vector<2x256xf32>
    %c16_i32_55 = arith.constant 16 : i32
    %261 = tpu.dynamic_rotate %13 by %c16_i32_55 dim 1 : vector<2x256xf32>, i32 -> vector<2x256xf32>
    %c17 = arith.constant 17 : index
    %262 = memref.load %arg1[%c17] : memref<98xf32, #tpu.memory_space<smem>>
    %c66 = arith.constant 66 : index
    %263 = memref.load %arg1[%c66] : memref<98xf32, #tpu.memory_space<smem>>
    %264 = vector.broadcast %262 : f32 to vector<2x256xf32>
    %265 = arith.mulf %260, %264 : vector<2x256xf32>
    %266 = vector.broadcast %263 : f32 to vector<2x256xf32>
    %267 = arith.mulf %261, %266 : vector<2x256xf32>
    %268 = arith.addf %265, %267 : vector<2x256xf32>
    %cst_56 = arith.constant 0.000000e+00 : f32
    %269 = vector.broadcast %cst_56 : f32 to vector<2x256xf32>
    %270 = arith.select %25, %268, %269 : vector<2x256xi1>, vector<2x256xf32>
    %271 = arith.addf %259, %270 : vector<2x256xf32>
    %c15_i32_57 = arith.constant 15 : i32
    %272 = tpu.dynamic_rotate %12 by %c15_i32_57 dim 1 : vector<2x256xf32>, i32 -> vector<2x256xf32>
    %c15_i32_58 = arith.constant 15 : i32
    %273 = tpu.dynamic_rotate %13 by %c15_i32_58 dim 1 : vector<2x256xf32>, i32 -> vector<2x256xf32>
    %c18 = arith.constant 18 : index
    %274 = memref.load %arg1[%c18] : memref<98xf32, #tpu.memory_space<smem>>
    %c67 = arith.constant 67 : index
    %275 = memref.load %arg1[%c67] : memref<98xf32, #tpu.memory_space<smem>>
    %276 = vector.broadcast %274 : f32 to vector<2x256xf32>
    %277 = arith.mulf %272, %276 : vector<2x256xf32>
    %278 = vector.broadcast %275 : f32 to vector<2x256xf32>
    %279 = arith.mulf %273, %278 : vector<2x256xf32>
    %280 = arith.addf %277, %279 : vector<2x256xf32>
    %281 = arith.andi %25, %39 : vector<2x256xi1>
    %cst_59 = arith.constant 0.000000e+00 : f32
    %282 = vector.broadcast %cst_59 : f32 to vector<2x256xf32>
    %283 = arith.select %281, %280, %282 : vector<2x256xi1>, vector<2x256xf32>
    %284 = arith.addf %271, %283 : vector<2x256xf32>
    %c14_i32_60 = arith.constant 14 : i32
    %285 = tpu.dynamic_rotate %12 by %c14_i32_60 dim 1 : vector<2x256xf32>, i32 -> vector<2x256xf32>
    %c14_i32_61 = arith.constant 14 : i32
    %286 = tpu.dynamic_rotate %13 by %c14_i32_61 dim 1 : vector<2x256xf32>, i32 -> vector<2x256xf32>
    %c19 = arith.constant 19 : index
    %287 = memref.load %arg1[%c19] : memref<98xf32, #tpu.memory_space<smem>>
    %c68 = arith.constant 68 : index
    %288 = memref.load %arg1[%c68] : memref<98xf32, #tpu.memory_space<smem>>
    %289 = vector.broadcast %287 : f32 to vector<2x256xf32>
    %290 = arith.mulf %285, %289 : vector<2x256xf32>
    %291 = vector.broadcast %288 : f32 to vector<2x256xf32>
    %292 = arith.mulf %286, %291 : vector<2x256xf32>
    %293 = arith.addf %290, %292 : vector<2x256xf32>
    %294 = arith.andi %25, %41 : vector<2x256xi1>
    %cst_62 = arith.constant 0.000000e+00 : f32
    %295 = vector.broadcast %cst_62 : f32 to vector<2x256xf32>
    %296 = arith.select %294, %293, %295 : vector<2x256xi1>, vector<2x256xf32>
    %297 = arith.addf %284, %296 : vector<2x256xf32>
    %c13_i32_63 = arith.constant 13 : i32
    %298 = tpu.dynamic_rotate %12 by %c13_i32_63 dim 1 : vector<2x256xf32>, i32 -> vector<2x256xf32>
    %c13_i32_64 = arith.constant 13 : i32
    %299 = tpu.dynamic_rotate %13 by %c13_i32_64 dim 1 : vector<2x256xf32>, i32 -> vector<2x256xf32>
    %c20 = arith.constant 20 : index
    %300 = memref.load %arg1[%c20] : memref<98xf32, #tpu.memory_space<smem>>
    %c69 = arith.constant 69 : index
    %301 = memref.load %arg1[%c69] : memref<98xf32, #tpu.memory_space<smem>>
    %302 = vector.broadcast %300 : f32 to vector<2x256xf32>
    %303 = arith.mulf %298, %302 : vector<2x256xf32>
    %304 = vector.broadcast %301 : f32 to vector<2x256xf32>
    %305 = arith.mulf %299, %304 : vector<2x256xf32>
    %306 = arith.addf %303, %305 : vector<2x256xf32>
    %307 = arith.andi %25, %43 : vector<2x256xi1>
    %cst_65 = arith.constant 0.000000e+00 : f32
    %308 = vector.broadcast %cst_65 : f32 to vector<2x256xf32>
    %309 = arith.select %307, %306, %308 : vector<2x256xi1>, vector<2x256xf32>
    %310 = arith.addf %297, %309 : vector<2x256xf32>
    %c3_i32_66 = arith.constant 3 : i32
    %311 = tpu.dynamic_rotate %12 by %c3_i32_66 dim 1 : vector<2x256xf32>, i32 -> vector<2x256xf32>
    %c3_i32_67 = arith.constant 3 : i32
    %312 = tpu.dynamic_rotate %13 by %c3_i32_67 dim 1 : vector<2x256xf32>, i32 -> vector<2x256xf32>
    %c21 = arith.constant 21 : index
    %313 = memref.load %arg1[%c21] : memref<98xf32, #tpu.memory_space<smem>>
    %c70 = arith.constant 70 : index
    %314 = memref.load %arg1[%c70] : memref<98xf32, #tpu.memory_space<smem>>
    %315 = vector.broadcast %313 : f32 to vector<2x256xf32>
    %316 = arith.mulf %311, %315 : vector<2x256xf32>
    %317 = vector.broadcast %314 : f32 to vector<2x256xf32>
    %318 = arith.mulf %312, %317 : vector<2x256xf32>
    %319 = arith.addf %316, %318 : vector<2x256xf32>
    %cst_68 = arith.constant 0.000000e+00 : f32
    %320 = vector.broadcast %cst_68 : f32 to vector<2x256xf32>
    %321 = arith.select %33, %319, %320 : vector<2x256xi1>, vector<2x256xf32>
    %c2_i32_69 = arith.constant 2 : i32
    %322 = tpu.dynamic_rotate %12 by %c2_i32_69 dim 1 : vector<2x256xf32>, i32 -> vector<2x256xf32>
    %c2_i32_70 = arith.constant 2 : i32
    %323 = tpu.dynamic_rotate %13 by %c2_i32_70 dim 1 : vector<2x256xf32>, i32 -> vector<2x256xf32>
    %c22 = arith.constant 22 : index
    %324 = memref.load %arg1[%c22] : memref<98xf32, #tpu.memory_space<smem>>
    %c71 = arith.constant 71 : index
    %325 = memref.load %arg1[%c71] : memref<98xf32, #tpu.memory_space<smem>>
    %326 = vector.broadcast %324 : f32 to vector<2x256xf32>
    %327 = arith.mulf %322, %326 : vector<2x256xf32>
    %328 = vector.broadcast %325 : f32 to vector<2x256xf32>
    %329 = arith.mulf %323, %328 : vector<2x256xf32>
    %330 = arith.addf %327, %329 : vector<2x256xf32>
    %cst_71 = arith.constant 0.000000e+00 : f32
    %331 = vector.broadcast %cst_71 : f32 to vector<2x256xf32>
    %332 = arith.select %35, %330, %331 : vector<2x256xi1>, vector<2x256xf32>
    %333 = arith.addf %321, %332 : vector<2x256xf32>
    %c1_i32_72 = arith.constant 1 : i32
    %334 = tpu.dynamic_rotate %12 by %c1_i32_72 dim 1 : vector<2x256xf32>, i32 -> vector<2x256xf32>
    %c1_i32_73 = arith.constant 1 : i32
    %335 = tpu.dynamic_rotate %13 by %c1_i32_73 dim 1 : vector<2x256xf32>, i32 -> vector<2x256xf32>
    %c23 = arith.constant 23 : index
    %336 = memref.load %arg1[%c23] : memref<98xf32, #tpu.memory_space<smem>>
    %c72 = arith.constant 72 : index
    %337 = memref.load %arg1[%c72] : memref<98xf32, #tpu.memory_space<smem>>
    %338 = vector.broadcast %336 : f32 to vector<2x256xf32>
    %339 = arith.mulf %334, %338 : vector<2x256xf32>
    %340 = vector.broadcast %337 : f32 to vector<2x256xf32>
    %341 = arith.mulf %335, %340 : vector<2x256xf32>
    %342 = arith.addf %339, %341 : vector<2x256xf32>
    %cst_74 = arith.constant 0.000000e+00 : f32
    %343 = vector.broadcast %cst_74 : f32 to vector<2x256xf32>
    %344 = arith.select %37, %342, %343 : vector<2x256xi1>, vector<2x256xf32>
    %345 = arith.addf %333, %344 : vector<2x256xf32>
    %c24 = arith.constant 24 : index
    %346 = memref.load %arg1[%c24] : memref<98xf32, #tpu.memory_space<smem>>
    %c73 = arith.constant 73 : index
    %347 = memref.load %arg1[%c73] : memref<98xf32, #tpu.memory_space<smem>>
    %348 = vector.broadcast %346 : f32 to vector<2x256xf32>
    %349 = arith.mulf %12, %348 : vector<2x256xf32>
    %350 = vector.broadcast %347 : f32 to vector<2x256xf32>
    %351 = arith.mulf %13, %350 : vector<2x256xf32>
    %352 = arith.addf %349, %351 : vector<2x256xf32>
    %353 = arith.addf %345, %352 : vector<2x256xf32>
    %c255_i32 = arith.constant 255 : i32
    %354 = tpu.dynamic_rotate %12 by %c255_i32 dim 1 : vector<2x256xf32>, i32 -> vector<2x256xf32>
    %c255_i32_75 = arith.constant 255 : i32
    %355 = tpu.dynamic_rotate %13 by %c255_i32_75 dim 1 : vector<2x256xf32>, i32 -> vector<2x256xf32>
    %c25 = arith.constant 25 : index
    %356 = memref.load %arg1[%c25] : memref<98xf32, #tpu.memory_space<smem>>
    %c74 = arith.constant 74 : index
    %357 = memref.load %arg1[%c74] : memref<98xf32, #tpu.memory_space<smem>>
    %358 = vector.broadcast %356 : f32 to vector<2x256xf32>
    %359 = arith.mulf %354, %358 : vector<2x256xf32>
    %360 = vector.broadcast %357 : f32 to vector<2x256xf32>
    %361 = arith.mulf %355, %360 : vector<2x256xf32>
    %362 = arith.addf %359, %361 : vector<2x256xf32>
    %cst_76 = arith.constant 0.000000e+00 : f32
    %363 = vector.broadcast %cst_76 : f32 to vector<2x256xf32>
    %364 = arith.select %39, %362, %363 : vector<2x256xi1>, vector<2x256xf32>
    %365 = arith.addf %353, %364 : vector<2x256xf32>
    %c254_i32 = arith.constant 254 : i32
    %366 = tpu.dynamic_rotate %12 by %c254_i32 dim 1 : vector<2x256xf32>, i32 -> vector<2x256xf32>
    %c254_i32_77 = arith.constant 254 : i32
    %367 = tpu.dynamic_rotate %13 by %c254_i32_77 dim 1 : vector<2x256xf32>, i32 -> vector<2x256xf32>
    %c26 = arith.constant 26 : index
    %368 = memref.load %arg1[%c26] : memref<98xf32, #tpu.memory_space<smem>>
    %c75 = arith.constant 75 : index
    %369 = memref.load %arg1[%c75] : memref<98xf32, #tpu.memory_space<smem>>
    %370 = vector.broadcast %368 : f32 to vector<2x256xf32>
    %371 = arith.mulf %366, %370 : vector<2x256xf32>
    %372 = vector.broadcast %369 : f32 to vector<2x256xf32>
    %373 = arith.mulf %367, %372 : vector<2x256xf32>
    %374 = arith.addf %371, %373 : vector<2x256xf32>
    %cst_78 = arith.constant 0.000000e+00 : f32
    %375 = vector.broadcast %cst_78 : f32 to vector<2x256xf32>
    %376 = arith.select %41, %374, %375 : vector<2x256xi1>, vector<2x256xf32>
    %377 = arith.addf %365, %376 : vector<2x256xf32>
    %c253_i32 = arith.constant 253 : i32
    %378 = tpu.dynamic_rotate %12 by %c253_i32 dim 1 : vector<2x256xf32>, i32 -> vector<2x256xf32>
    %c253_i32_79 = arith.constant 253 : i32
    %379 = tpu.dynamic_rotate %13 by %c253_i32_79 dim 1 : vector<2x256xf32>, i32 -> vector<2x256xf32>
    %c27 = arith.constant 27 : index
    %380 = memref.load %arg1[%c27] : memref<98xf32, #tpu.memory_space<smem>>
    %c76 = arith.constant 76 : index
    %381 = memref.load %arg1[%c76] : memref<98xf32, #tpu.memory_space<smem>>
    %382 = vector.broadcast %380 : f32 to vector<2x256xf32>
    %383 = arith.mulf %378, %382 : vector<2x256xf32>
    %384 = vector.broadcast %381 : f32 to vector<2x256xf32>
    %385 = arith.mulf %379, %384 : vector<2x256xf32>
    %386 = arith.addf %383, %385 : vector<2x256xf32>
    %cst_80 = arith.constant 0.000000e+00 : f32
    %387 = vector.broadcast %cst_80 : f32 to vector<2x256xf32>
    %388 = arith.select %43, %386, %387 : vector<2x256xi1>, vector<2x256xf32>
    %389 = arith.addf %377, %388 : vector<2x256xf32>
    %c243_i32 = arith.constant 243 : i32
    %390 = tpu.dynamic_rotate %12 by %c243_i32 dim 1 : vector<2x256xf32>, i32 -> vector<2x256xf32>
    %c243_i32_81 = arith.constant 243 : i32
    %391 = tpu.dynamic_rotate %13 by %c243_i32_81 dim 1 : vector<2x256xf32>, i32 -> vector<2x256xf32>
    %c28 = arith.constant 28 : index
    %392 = memref.load %arg1[%c28] : memref<98xf32, #tpu.memory_space<smem>>
    %c77 = arith.constant 77 : index
    %393 = memref.load %arg1[%c77] : memref<98xf32, #tpu.memory_space<smem>>
    %394 = vector.broadcast %392 : f32 to vector<2x256xf32>
    %395 = arith.mulf %390, %394 : vector<2x256xf32>
    %396 = vector.broadcast %393 : f32 to vector<2x256xf32>
    %397 = arith.mulf %391, %396 : vector<2x256xf32>
    %398 = arith.addf %395, %397 : vector<2x256xf32>
    %399 = arith.andi %27, %33 : vector<2x256xi1>
    %cst_82 = arith.constant 0.000000e+00 : f32
    %400 = vector.broadcast %cst_82 : f32 to vector<2x256xf32>
    %401 = arith.select %399, %398, %400 : vector<2x256xi1>, vector<2x256xf32>
    %c242_i32 = arith.constant 242 : i32
    %402 = tpu.dynamic_rotate %12 by %c242_i32 dim 1 : vector<2x256xf32>, i32 -> vector<2x256xf32>
    %c242_i32_83 = arith.constant 242 : i32
    %403 = tpu.dynamic_rotate %13 by %c242_i32_83 dim 1 : vector<2x256xf32>, i32 -> vector<2x256xf32>
    %c29 = arith.constant 29 : index
    %404 = memref.load %arg1[%c29] : memref<98xf32, #tpu.memory_space<smem>>
    %c78 = arith.constant 78 : index
    %405 = memref.load %arg1[%c78] : memref<98xf32, #tpu.memory_space<smem>>
    %406 = vector.broadcast %404 : f32 to vector<2x256xf32>
    %407 = arith.mulf %402, %406 : vector<2x256xf32>
    %408 = vector.broadcast %405 : f32 to vector<2x256xf32>
    %409 = arith.mulf %403, %408 : vector<2x256xf32>
    %410 = arith.addf %407, %409 : vector<2x256xf32>
    %411 = arith.andi %27, %35 : vector<2x256xi1>
    %cst_84 = arith.constant 0.000000e+00 : f32
    %412 = vector.broadcast %cst_84 : f32 to vector<2x256xf32>
    %413 = arith.select %411, %410, %412 : vector<2x256xi1>, vector<2x256xf32>
    %414 = arith.addf %401, %413 : vector<2x256xf32>
    %c241_i32 = arith.constant 241 : i32
    %415 = tpu.dynamic_rotate %12 by %c241_i32 dim 1 : vector<2x256xf32>, i32 -> vector<2x256xf32>
    %c241_i32_85 = arith.constant 241 : i32
    %416 = tpu.dynamic_rotate %13 by %c241_i32_85 dim 1 : vector<2x256xf32>, i32 -> vector<2x256xf32>
    %c30 = arith.constant 30 : index
    %417 = memref.load %arg1[%c30] : memref<98xf32, #tpu.memory_space<smem>>
    %c79 = arith.constant 79 : index
    %418 = memref.load %arg1[%c79] : memref<98xf32, #tpu.memory_space<smem>>
    %419 = vector.broadcast %417 : f32 to vector<2x256xf32>
    %420 = arith.mulf %415, %419 : vector<2x256xf32>
    %421 = vector.broadcast %418 : f32 to vector<2x256xf32>
    %422 = arith.mulf %416, %421 : vector<2x256xf32>
    %423 = arith.addf %420, %422 : vector<2x256xf32>
    %424 = arith.andi %27, %37 : vector<2x256xi1>
    %cst_86 = arith.constant 0.000000e+00 : f32
    %425 = vector.broadcast %cst_86 : f32 to vector<2x256xf32>
    %426 = arith.select %424, %423, %425 : vector<2x256xi1>, vector<2x256xf32>
    %427 = arith.addf %414, %426 : vector<2x256xf32>
    %c240_i32 = arith.constant 240 : i32
    %428 = tpu.dynamic_rotate %12 by %c240_i32 dim 1 : vector<2x256xf32>, i32 -> vector<2x256xf32>
    %c240_i32_87 = arith.constant 240 : i32
    %429 = tpu.dynamic_rotate %13 by %c240_i32_87 dim 1 : vector<2x256xf32>, i32 -> vector<2x256xf32>
    %c31 = arith.constant 31 : index
    %430 = memref.load %arg1[%c31] : memref<98xf32, #tpu.memory_space<smem>>
    %c80 = arith.constant 80 : index
    %431 = memref.load %arg1[%c80] : memref<98xf32, #tpu.memory_space<smem>>
    %432 = vector.broadcast %430 : f32 to vector<2x256xf32>
    %433 = arith.mulf %428, %432 : vector<2x256xf32>
    %434 = vector.broadcast %431 : f32 to vector<2x256xf32>
    %435 = arith.mulf %429, %434 : vector<2x256xf32>
    %436 = arith.addf %433, %435 : vector<2x256xf32>
    %cst_88 = arith.constant 0.000000e+00 : f32
    %437 = vector.broadcast %cst_88 : f32 to vector<2x256xf32>
    %438 = arith.select %27, %436, %437 : vector<2x256xi1>, vector<2x256xf32>
    %439 = arith.addf %427, %438 : vector<2x256xf32>
    %c239_i32 = arith.constant 239 : i32
    %440 = tpu.dynamic_rotate %12 by %c239_i32 dim 1 : vector<2x256xf32>, i32 -> vector<2x256xf32>
    %c239_i32_89 = arith.constant 239 : i32
    %441 = tpu.dynamic_rotate %13 by %c239_i32_89 dim 1 : vector<2x256xf32>, i32 -> vector<2x256xf32>
    %c32 = arith.constant 32 : index
    %442 = memref.load %arg1[%c32] : memref<98xf32, #tpu.memory_space<smem>>
    %c81 = arith.constant 81 : index
    %443 = memref.load %arg1[%c81] : memref<98xf32, #tpu.memory_space<smem>>
    %444 = vector.broadcast %442 : f32 to vector<2x256xf32>
    %445 = arith.mulf %440, %444 : vector<2x256xf32>
    %446 = vector.broadcast %443 : f32 to vector<2x256xf32>
    %447 = arith.mulf %441, %446 : vector<2x256xf32>
    %448 = arith.addf %445, %447 : vector<2x256xf32>
    %449 = arith.andi %27, %39 : vector<2x256xi1>
    %cst_90 = arith.constant 0.000000e+00 : f32
    %450 = vector.broadcast %cst_90 : f32 to vector<2x256xf32>
    %451 = arith.select %449, %448, %450 : vector<2x256xi1>, vector<2x256xf32>
    %452 = arith.addf %439, %451 : vector<2x256xf32>
    %c238_i32 = arith.constant 238 : i32
    %453 = tpu.dynamic_rotate %12 by %c238_i32 dim 1 : vector<2x256xf32>, i32 -> vector<2x256xf32>
    %c238_i32_91 = arith.constant 238 : i32
    %454 = tpu.dynamic_rotate %13 by %c238_i32_91 dim 1 : vector<2x256xf32>, i32 -> vector<2x256xf32>
    %c33 = arith.constant 33 : index
    %455 = memref.load %arg1[%c33] : memref<98xf32, #tpu.memory_space<smem>>
    %c82 = arith.constant 82 : index
    %456 = memref.load %arg1[%c82] : memref<98xf32, #tpu.memory_space<smem>>
    %457 = vector.broadcast %455 : f32 to vector<2x256xf32>
    %458 = arith.mulf %453, %457 : vector<2x256xf32>
    %459 = vector.broadcast %456 : f32 to vector<2x256xf32>
    %460 = arith.mulf %454, %459 : vector<2x256xf32>
    %461 = arith.addf %458, %460 : vector<2x256xf32>
    %462 = arith.andi %27, %41 : vector<2x256xi1>
    %cst_92 = arith.constant 0.000000e+00 : f32
    %463 = vector.broadcast %cst_92 : f32 to vector<2x256xf32>
    %464 = arith.select %462, %461, %463 : vector<2x256xi1>, vector<2x256xf32>
    %465 = arith.addf %452, %464 : vector<2x256xf32>
    %c237_i32 = arith.constant 237 : i32
    %466 = tpu.dynamic_rotate %12 by %c237_i32 dim 1 : vector<2x256xf32>, i32 -> vector<2x256xf32>
    %c237_i32_93 = arith.constant 237 : i32
    %467 = tpu.dynamic_rotate %13 by %c237_i32_93 dim 1 : vector<2x256xf32>, i32 -> vector<2x256xf32>
    %c34 = arith.constant 34 : index
    %468 = memref.load %arg1[%c34] : memref<98xf32, #tpu.memory_space<smem>>
    %c83 = arith.constant 83 : index
    %469 = memref.load %arg1[%c83] : memref<98xf32, #tpu.memory_space<smem>>
    %470 = vector.broadcast %468 : f32 to vector<2x256xf32>
    %471 = arith.mulf %466, %470 : vector<2x256xf32>
    %472 = vector.broadcast %469 : f32 to vector<2x256xf32>
    %473 = arith.mulf %467, %472 : vector<2x256xf32>
    %474 = arith.addf %471, %473 : vector<2x256xf32>
    %475 = arith.andi %27, %43 : vector<2x256xi1>
    %cst_94 = arith.constant 0.000000e+00 : f32
    %476 = vector.broadcast %cst_94 : f32 to vector<2x256xf32>
    %477 = arith.select %475, %474, %476 : vector<2x256xi1>, vector<2x256xf32>
    %478 = arith.addf %465, %477 : vector<2x256xf32>
    %479 = arith.addf %132, %478 : vector<2x256xf32>
    %c227_i32 = arith.constant 227 : i32
    %480 = tpu.dynamic_rotate %12 by %c227_i32 dim 1 : vector<2x256xf32>, i32 -> vector<2x256xf32>
    %c227_i32_95 = arith.constant 227 : i32
    %481 = tpu.dynamic_rotate %13 by %c227_i32_95 dim 1 : vector<2x256xf32>, i32 -> vector<2x256xf32>
    %c35 = arith.constant 35 : index
    %482 = memref.load %arg1[%c35] : memref<98xf32, #tpu.memory_space<smem>>
    %c84 = arith.constant 84 : index
    %483 = memref.load %arg1[%c84] : memref<98xf32, #tpu.memory_space<smem>>
    %484 = vector.broadcast %482 : f32 to vector<2x256xf32>
    %485 = arith.mulf %480, %484 : vector<2x256xf32>
    %486 = vector.broadcast %483 : f32 to vector<2x256xf32>
    %487 = arith.mulf %481, %486 : vector<2x256xf32>
    %488 = arith.addf %485, %487 : vector<2x256xf32>
    %489 = arith.andi %29, %33 : vector<2x256xi1>
    %cst_96 = arith.constant 0.000000e+00 : f32
    %490 = vector.broadcast %cst_96 : f32 to vector<2x256xf32>
    %491 = arith.select %489, %488, %490 : vector<2x256xi1>, vector<2x256xf32>
    %c226_i32 = arith.constant 226 : i32
    %492 = tpu.dynamic_rotate %12 by %c226_i32 dim 1 : vector<2x256xf32>, i32 -> vector<2x256xf32>
    %c226_i32_97 = arith.constant 226 : i32
    %493 = tpu.dynamic_rotate %13 by %c226_i32_97 dim 1 : vector<2x256xf32>, i32 -> vector<2x256xf32>
    %c36 = arith.constant 36 : index
    %494 = memref.load %arg1[%c36] : memref<98xf32, #tpu.memory_space<smem>>
    %c85 = arith.constant 85 : index
    %495 = memref.load %arg1[%c85] : memref<98xf32, #tpu.memory_space<smem>>
    %496 = vector.broadcast %494 : f32 to vector<2x256xf32>
    %497 = arith.mulf %492, %496 : vector<2x256xf32>
    %498 = vector.broadcast %495 : f32 to vector<2x256xf32>
    %499 = arith.mulf %493, %498 : vector<2x256xf32>
    %500 = arith.addf %497, %499 : vector<2x256xf32>
    %501 = arith.andi %29, %35 : vector<2x256xi1>
    %cst_98 = arith.constant 0.000000e+00 : f32
    %502 = vector.broadcast %cst_98 : f32 to vector<2x256xf32>
    %503 = arith.select %501, %500, %502 : vector<2x256xi1>, vector<2x256xf32>
    %504 = arith.addf %491, %503 : vector<2x256xf32>
    %c225_i32 = arith.constant 225 : i32
    %505 = tpu.dynamic_rotate %12 by %c225_i32 dim 1 : vector<2x256xf32>, i32 -> vector<2x256xf32>
    %c225_i32_99 = arith.constant 225 : i32
    %506 = tpu.dynamic_rotate %13 by %c225_i32_99 dim 1 : vector<2x256xf32>, i32 -> vector<2x256xf32>
    %c37 = arith.constant 37 : index
    %507 = memref.load %arg1[%c37] : memref<98xf32, #tpu.memory_space<smem>>
    %c86 = arith.constant 86 : index
    %508 = memref.load %arg1[%c86] : memref<98xf32, #tpu.memory_space<smem>>
    %509 = vector.broadcast %507 : f32 to vector<2x256xf32>
    %510 = arith.mulf %505, %509 : vector<2x256xf32>
    %511 = vector.broadcast %508 : f32 to vector<2x256xf32>
    %512 = arith.mulf %506, %511 : vector<2x256xf32>
    %513 = arith.addf %510, %512 : vector<2x256xf32>
    %514 = arith.andi %29, %37 : vector<2x256xi1>
    %cst_100 = arith.constant 0.000000e+00 : f32
    %515 = vector.broadcast %cst_100 : f32 to vector<2x256xf32>
    %516 = arith.select %514, %513, %515 : vector<2x256xi1>, vector<2x256xf32>
    %517 = arith.addf %504, %516 : vector<2x256xf32>
    %c224_i32 = arith.constant 224 : i32
    %518 = tpu.dynamic_rotate %12 by %c224_i32 dim 1 : vector<2x256xf32>, i32 -> vector<2x256xf32>
    %c224_i32_101 = arith.constant 224 : i32
    %519 = tpu.dynamic_rotate %13 by %c224_i32_101 dim 1 : vector<2x256xf32>, i32 -> vector<2x256xf32>
    %c38 = arith.constant 38 : index
    %520 = memref.load %arg1[%c38] : memref<98xf32, #tpu.memory_space<smem>>
    %c87 = arith.constant 87 : index
    %521 = memref.load %arg1[%c87] : memref<98xf32, #tpu.memory_space<smem>>
    %522 = vector.broadcast %520 : f32 to vector<2x256xf32>
    %523 = arith.mulf %518, %522 : vector<2x256xf32>
    %524 = vector.broadcast %521 : f32 to vector<2x256xf32>
    %525 = arith.mulf %519, %524 : vector<2x256xf32>
    %526 = arith.addf %523, %525 : vector<2x256xf32>
    %cst_102 = arith.constant 0.000000e+00 : f32
    %527 = vector.broadcast %cst_102 : f32 to vector<2x256xf32>
    %528 = arith.select %29, %526, %527 : vector<2x256xi1>, vector<2x256xf32>
    %529 = arith.addf %517, %528 : vector<2x256xf32>
    %c223_i32 = arith.constant 223 : i32
    %530 = tpu.dynamic_rotate %12 by %c223_i32 dim 1 : vector<2x256xf32>, i32 -> vector<2x256xf32>
    %c223_i32_103 = arith.constant 223 : i32
    %531 = tpu.dynamic_rotate %13 by %c223_i32_103 dim 1 : vector<2x256xf32>, i32 -> vector<2x256xf32>
    %c39 = arith.constant 39 : index
    %532 = memref.load %arg1[%c39] : memref<98xf32, #tpu.memory_space<smem>>
    %c88 = arith.constant 88 : index
    %533 = memref.load %arg1[%c88] : memref<98xf32, #tpu.memory_space<smem>>
    %534 = vector.broadcast %532 : f32 to vector<2x256xf32>
    %535 = arith.mulf %530, %534 : vector<2x256xf32>
    %536 = vector.broadcast %533 : f32 to vector<2x256xf32>
    %537 = arith.mulf %531, %536 : vector<2x256xf32>
    %538 = arith.addf %535, %537 : vector<2x256xf32>
    %539 = arith.andi %29, %39 : vector<2x256xi1>
    %cst_104 = arith.constant 0.000000e+00 : f32
    %540 = vector.broadcast %cst_104 : f32 to vector<2x256xf32>
    %541 = arith.select %539, %538, %540 : vector<2x256xi1>, vector<2x256xf32>
    %542 = arith.addf %529, %541 : vector<2x256xf32>
    %c222_i32 = arith.constant 222 : i32
    %543 = tpu.dynamic_rotate %12 by %c222_i32 dim 1 : vector<2x256xf32>, i32 -> vector<2x256xf32>
    %c222_i32_105 = arith.constant 222 : i32
    %544 = tpu.dynamic_rotate %13 by %c222_i32_105 dim 1 : vector<2x256xf32>, i32 -> vector<2x256xf32>
    %c40 = arith.constant 40 : index
    %545 = memref.load %arg1[%c40] : memref<98xf32, #tpu.memory_space<smem>>
    %c89 = arith.constant 89 : index
    %546 = memref.load %arg1[%c89] : memref<98xf32, #tpu.memory_space<smem>>
    %547 = vector.broadcast %545 : f32 to vector<2x256xf32>
    %548 = arith.mulf %543, %547 : vector<2x256xf32>
    %549 = vector.broadcast %546 : f32 to vector<2x256xf32>
    %550 = arith.mulf %544, %549 : vector<2x256xf32>
    %551 = arith.addf %548, %550 : vector<2x256xf32>
    %552 = arith.andi %29, %41 : vector<2x256xi1>
    %cst_106 = arith.constant 0.000000e+00 : f32
    %553 = vector.broadcast %cst_106 : f32 to vector<2x256xf32>
    %554 = arith.select %552, %551, %553 : vector<2x256xi1>, vector<2x256xf32>
    %555 = arith.addf %542, %554 : vector<2x256xf32>
    %c221_i32 = arith.constant 221 : i32
    %556 = tpu.dynamic_rotate %12 by %c221_i32 dim 1 : vector<2x256xf32>, i32 -> vector<2x256xf32>
    %c221_i32_107 = arith.constant 221 : i32
    %557 = tpu.dynamic_rotate %13 by %c221_i32_107 dim 1 : vector<2x256xf32>, i32 -> vector<2x256xf32>
    %c41 = arith.constant 41 : index
    %558 = memref.load %arg1[%c41] : memref<98xf32, #tpu.memory_space<smem>>
    %c90 = arith.constant 90 : index
    %559 = memref.load %arg1[%c90] : memref<98xf32, #tpu.memory_space<smem>>
    %560 = vector.broadcast %558 : f32 to vector<2x256xf32>
    %561 = arith.mulf %556, %560 : vector<2x256xf32>
    %562 = vector.broadcast %559 : f32 to vector<2x256xf32>
    %563 = arith.mulf %557, %562 : vector<2x256xf32>
    %564 = arith.addf %561, %563 : vector<2x256xf32>
    %565 = arith.andi %29, %43 : vector<2x256xi1>
    %cst_108 = arith.constant 0.000000e+00 : f32
    %566 = vector.broadcast %cst_108 : f32 to vector<2x256xf32>
    %567 = arith.select %565, %564, %566 : vector<2x256xi1>, vector<2x256xf32>
    %568 = arith.addf %555, %567 : vector<2x256xf32>
    %569 = arith.addf %221, %568 : vector<2x256xf32>
    %c211_i32 = arith.constant 211 : i32
    %570 = tpu.dynamic_rotate %12 by %c211_i32 dim 1 : vector<2x256xf32>, i32 -> vector<2x256xf32>
    %c211_i32_109 = arith.constant 211 : i32
    %571 = tpu.dynamic_rotate %13 by %c211_i32_109 dim 1 : vector<2x256xf32>, i32 -> vector<2x256xf32>
    %c42 = arith.constant 42 : index
    %572 = memref.load %arg1[%c42] : memref<98xf32, #tpu.memory_space<smem>>
    %c91 = arith.constant 91 : index
    %573 = memref.load %arg1[%c91] : memref<98xf32, #tpu.memory_space<smem>>
    %574 = vector.broadcast %572 : f32 to vector<2x256xf32>
    %575 = arith.mulf %570, %574 : vector<2x256xf32>
    %576 = vector.broadcast %573 : f32 to vector<2x256xf32>
    %577 = arith.mulf %571, %576 : vector<2x256xf32>
    %578 = arith.addf %575, %577 : vector<2x256xf32>
    %579 = arith.andi %31, %33 : vector<2x256xi1>
    %cst_110 = arith.constant 0.000000e+00 : f32
    %580 = vector.broadcast %cst_110 : f32 to vector<2x256xf32>
    %581 = arith.select %579, %578, %580 : vector<2x256xi1>, vector<2x256xf32>
    %c210_i32 = arith.constant 210 : i32
    %582 = tpu.dynamic_rotate %12 by %c210_i32 dim 1 : vector<2x256xf32>, i32 -> vector<2x256xf32>
    %c210_i32_111 = arith.constant 210 : i32
    %583 = tpu.dynamic_rotate %13 by %c210_i32_111 dim 1 : vector<2x256xf32>, i32 -> vector<2x256xf32>
    %c43 = arith.constant 43 : index
    %584 = memref.load %arg1[%c43] : memref<98xf32, #tpu.memory_space<smem>>
    %c92 = arith.constant 92 : index
    %585 = memref.load %arg1[%c92] : memref<98xf32, #tpu.memory_space<smem>>
    %586 = vector.broadcast %584 : f32 to vector<2x256xf32>
    %587 = arith.mulf %582, %586 : vector<2x256xf32>
    %588 = vector.broadcast %585 : f32 to vector<2x256xf32>
    %589 = arith.mulf %583, %588 : vector<2x256xf32>
    %590 = arith.addf %587, %589 : vector<2x256xf32>
    %591 = arith.andi %31, %35 : vector<2x256xi1>
    %cst_112 = arith.constant 0.000000e+00 : f32
    %592 = vector.broadcast %cst_112 : f32 to vector<2x256xf32>
    %593 = arith.select %591, %590, %592 : vector<2x256xi1>, vector<2x256xf32>
    %594 = arith.addf %581, %593 : vector<2x256xf32>
    %c209_i32 = arith.constant 209 : i32
    %595 = tpu.dynamic_rotate %12 by %c209_i32 dim 1 : vector<2x256xf32>, i32 -> vector<2x256xf32>
    %c209_i32_113 = arith.constant 209 : i32
    %596 = tpu.dynamic_rotate %13 by %c209_i32_113 dim 1 : vector<2x256xf32>, i32 -> vector<2x256xf32>
    %c44 = arith.constant 44 : index
    %597 = memref.load %arg1[%c44] : memref<98xf32, #tpu.memory_space<smem>>
    %c93 = arith.constant 93 : index
    %598 = memref.load %arg1[%c93] : memref<98xf32, #tpu.memory_space<smem>>
    %599 = vector.broadcast %597 : f32 to vector<2x256xf32>
    %600 = arith.mulf %595, %599 : vector<2x256xf32>
    %601 = vector.broadcast %598 : f32 to vector<2x256xf32>
    %602 = arith.mulf %596, %601 : vector<2x256xf32>
    %603 = arith.addf %600, %602 : vector<2x256xf32>
    %604 = arith.andi %31, %37 : vector<2x256xi1>
    %cst_114 = arith.constant 0.000000e+00 : f32
    %605 = vector.broadcast %cst_114 : f32 to vector<2x256xf32>
    %606 = arith.select %604, %603, %605 : vector<2x256xi1>, vector<2x256xf32>
    %607 = arith.addf %594, %606 : vector<2x256xf32>
    %c208_i32 = arith.constant 208 : i32
    %608 = tpu.dynamic_rotate %12 by %c208_i32 dim 1 : vector<2x256xf32>, i32 -> vector<2x256xf32>
    %c208_i32_115 = arith.constant 208 : i32
    %609 = tpu.dynamic_rotate %13 by %c208_i32_115 dim 1 : vector<2x256xf32>, i32 -> vector<2x256xf32>
    %c45 = arith.constant 45 : index
    %610 = memref.load %arg1[%c45] : memref<98xf32, #tpu.memory_space<smem>>
    %c94 = arith.constant 94 : index
    %611 = memref.load %arg1[%c94] : memref<98xf32, #tpu.memory_space<smem>>
    %612 = vector.broadcast %610 : f32 to vector<2x256xf32>
    %613 = arith.mulf %608, %612 : vector<2x256xf32>
    %614 = vector.broadcast %611 : f32 to vector<2x256xf32>
    %615 = arith.mulf %609, %614 : vector<2x256xf32>
    %616 = arith.addf %613, %615 : vector<2x256xf32>
    %cst_116 = arith.constant 0.000000e+00 : f32
    %617 = vector.broadcast %cst_116 : f32 to vector<2x256xf32>
    %618 = arith.select %31, %616, %617 : vector<2x256xi1>, vector<2x256xf32>
    %619 = arith.addf %607, %618 : vector<2x256xf32>
    %c207_i32 = arith.constant 207 : i32
    %620 = tpu.dynamic_rotate %12 by %c207_i32 dim 1 : vector<2x256xf32>, i32 -> vector<2x256xf32>
    %c207_i32_117 = arith.constant 207 : i32
    %621 = tpu.dynamic_rotate %13 by %c207_i32_117 dim 1 : vector<2x256xf32>, i32 -> vector<2x256xf32>
    %c46 = arith.constant 46 : index
    %622 = memref.load %arg1[%c46] : memref<98xf32, #tpu.memory_space<smem>>
    %c95 = arith.constant 95 : index
    %623 = memref.load %arg1[%c95] : memref<98xf32, #tpu.memory_space<smem>>
    %624 = vector.broadcast %622 : f32 to vector<2x256xf32>
    %625 = arith.mulf %620, %624 : vector<2x256xf32>
    %626 = vector.broadcast %623 : f32 to vector<2x256xf32>
    %627 = arith.mulf %621, %626 : vector<2x256xf32>
    %628 = arith.addf %625, %627 : vector<2x256xf32>
    %629 = arith.andi %31, %39 : vector<2x256xi1>
    %cst_118 = arith.constant 0.000000e+00 : f32
    %630 = vector.broadcast %cst_118 : f32 to vector<2x256xf32>
    %631 = arith.select %629, %628, %630 : vector<2x256xi1>, vector<2x256xf32>
    %632 = arith.addf %619, %631 : vector<2x256xf32>
    %c206_i32 = arith.constant 206 : i32
    %633 = tpu.dynamic_rotate %12 by %c206_i32 dim 1 : vector<2x256xf32>, i32 -> vector<2x256xf32>
    %c206_i32_119 = arith.constant 206 : i32
    %634 = tpu.dynamic_rotate %13 by %c206_i32_119 dim 1 : vector<2x256xf32>, i32 -> vector<2x256xf32>
    %c47 = arith.constant 47 : index
    %635 = memref.load %arg1[%c47] : memref<98xf32, #tpu.memory_space<smem>>
    %c96 = arith.constant 96 : index
    %636 = memref.load %arg1[%c96] : memref<98xf32, #tpu.memory_space<smem>>
    %637 = vector.broadcast %635 : f32 to vector<2x256xf32>
    %638 = arith.mulf %633, %637 : vector<2x256xf32>
    %639 = vector.broadcast %636 : f32 to vector<2x256xf32>
    %640 = arith.mulf %634, %639 : vector<2x256xf32>
    %641 = arith.addf %638, %640 : vector<2x256xf32>
    %642 = arith.andi %31, %41 : vector<2x256xi1>
    %cst_120 = arith.constant 0.000000e+00 : f32
    %643 = vector.broadcast %cst_120 : f32 to vector<2x256xf32>
    %644 = arith.select %642, %641, %643 : vector<2x256xi1>, vector<2x256xf32>
    %645 = arith.addf %632, %644 : vector<2x256xf32>
    %c205_i32 = arith.constant 205 : i32
    %646 = tpu.dynamic_rotate %12 by %c205_i32 dim 1 : vector<2x256xf32>, i32 -> vector<2x256xf32>
    %c205_i32_121 = arith.constant 205 : i32
    %647 = tpu.dynamic_rotate %13 by %c205_i32_121 dim 1 : vector<2x256xf32>, i32 -> vector<2x256xf32>
    %c48 = arith.constant 48 : index
    %648 = memref.load %arg1[%c48] : memref<98xf32, #tpu.memory_space<smem>>
    %c97 = arith.constant 97 : index
    %649 = memref.load %arg1[%c97] : memref<98xf32, #tpu.memory_space<smem>>
    %650 = vector.broadcast %648 : f32 to vector<2x256xf32>
    %651 = arith.mulf %646, %650 : vector<2x256xf32>
    %652 = vector.broadcast %649 : f32 to vector<2x256xf32>
    %653 = arith.mulf %647, %652 : vector<2x256xf32>
    %654 = arith.addf %651, %653 : vector<2x256xf32>
    %655 = arith.andi %31, %43 : vector<2x256xi1>
    %cst_122 = arith.constant 0.000000e+00 : f32
    %656 = vector.broadcast %cst_122 : f32 to vector<2x256xf32>
    %657 = arith.select %655, %654, %656 : vector<2x256xi1>, vector<2x256xf32>
    %658 = arith.addf %645, %657 : vector<2x256xf32>
    %659 = arith.addf %310, %658 : vector<2x256xf32>
    %660 = arith.addf %479, %569 : vector<2x256xf32>
    %661 = arith.addf %659, %389 : vector<2x256xf32>
    %662 = arith.addf %660, %661 : vector<2x256xf32>
    %663 = arith.negf %662 : vector<2x256xf32>
    %664 = math.exp %663 : vector<2x256xf32>
    %cst_123 = arith.constant 1.000000e+00 : f32
    %665 = vector.broadcast %cst_123 : f32 to vector<2x256xf32>
    %666 = arith.addf %665, %664 : vector<2x256xf32>
    %667 = arith.divf %665, %666 : vector<2x256xf32>
    %c0_124 = arith.constant 0 : index
    %c0_125 = arith.constant 0 : index
    %c0_126 = arith.constant 0 : index
    %668 = vector.load %arg5[%c0_124, %c0_125, %c0_126] : memref<2x1x256xf32, #tpu.memory_space<vmem>>, vector<2x1x256xf32>
    %669 = vector.shape_cast %668 : vector<2x1x256xf32> to vector<2x256xf32>
    %670 = vector.shape_cast %667 : vector<2x256xf32> to vector<2x1x256xf32>
    tpu.vector_store %arg5[%c0_124, %c0_125, %c0_126], %670 {strides = array<i32>} : memref<2x1x256xf32, #tpu.memory_space<vmem>>, vector<2x1x256xf32>,
    return
  }
  func.func @transform_0(%arg0: i32) -> i32 {
    %c0_i32 = arith.constant 0 : i32
    %c0_i32_0 = arith.constant 0 : i32
    return %c0_i32 : i32
  }
  func.func @transform_1(%arg0: i32) -> (i32, i32) {
    %c0_i32 = arith.constant 0 : i32
    %c0_i32_0 = arith.constant 0 : i32
    %c0_i32_1 = arith.constant 0 : i32
    return %c0_i32, %c0_i32_0 : i32, i32
  }
  func.func @transform_2(%arg0: i32) -> (i32, i32) {
    %c0_i32 = arith.constant 0 : i32
    %c0_i32_0 = arith.constant 0 : i32
    %c0_i32_1 = arith.constant 0 : i32
    return %c0_i32, %c0_i32_0 : i32, i32
  }
  func.func @transform_3(%arg0: i32) -> (i32, i32, i32) {
    %c0_i32 = arith.constant 0 : i32
    %c0_i32_0 = arith.constant 0 : i32
    %c0_i32_1 = arith.constant 0 : i32
    return %arg0, %c0_i32, %c0_i32_0 : i32, i32, i32
  }
  func.func @transform_4(%arg0: i32) -> (i32, i32, i32) {
    %c0_i32 = arith.constant 0 : i32
    %c0_i32_0 = arith.constant 0 : i32
    %c0_i32_1 = arith.constant 0 : i32
    return %arg0, %c0_i32, %c0_i32_0 : i32, i32, i32
  }
}

</mosaic_0001>

<llo_original>
// kernel: spatial_attention.1
$region0: #{spatial_attention.1}
  #allocation0 [shape = 'u32[]', space=smem, size = 0x4, offset = 0x4, fixed_abs, tag = 'smem constant byte address 0x4 - core index']
  #allocation1 [shape = 'u32[144,128]{1,0:T(1,128)}', space=vmem, size = 0x12000, scoped, tag = 'internal scratch']
  %s0 = inlined_call_operand.vmem [shape: f32[98], index: 0, kind: input, shape index: {}]
  %s1 = inlined_call_operand.vmem [shape: s32[1,256], index: 1, kind: input, shape index: {}]
  %s2 = inlined_call_operand.vmem [shape: s32[1,256], index: 2, kind: input, shape index: {}]
  %s3 = inlined_call_operand.vmem [shape: f32[2,4,256], index: 3, kind: input, shape index: {}]
  %s4 = inlined_call_operand.vmem [shape: f32[2,1,256], index: 4, kind: output, shape index: {}]
  %s5 = sld [smem:[#allocation0]]
  $region30: #{spatial_attention.1} parent=0
    _
  %s7 = ssub.s32 1, %s5
  %s8 = scalar_select 0, %s7, %s5
  $region1: #{spatial_attention.1} parent=0
    #allocation2 [shape = 'u8[512]{0}', space=smem, size = 0x200, scoped, tag = 'input window, operand 0, single buffered']
    #allocation3 [shape = 's32[1]{0}', space=sflag, size = 0x4, scoped, tag = 'scoped memory for spatial_attention.1']
    %9 = vsyncpa [#allocation3], 0
    // Predicated region
    $region2: #{spatial_attention.1} parent=1 // pred_check
      _
    $region3: #{spatial_attention.1} parent=1 // pred_check_branch
      %11 = sbr.rel (0) target = $region5
    $region4: #{spatial_attention.1} parent=1 // pred_region
      %s13 = ssub.s32 16, 16
      %14 = vsyncadd [#allocation3], %s13
      %s16 = sshll.u32 %s0, 4
      %s17 = int_to_ptr.vmem [resolvable:$true] %s16
      %19 = dma.vmem_to_smem %s17, 16, [#allocation2], [#allocation3]
    $region5: #{spatial_attention.1} parent=1 // pred_fallthru
      _
    // Predicated region
    $region6: #{spatial_attention.1} parent=1 // pred_check
      _
    $region7: #{spatial_attention.1} parent=1 // pred_check_branch
      %21 = sbr.rel (0) target = $region9
    $region8: #{spatial_attention.1} parent=1 // pred_region
      _
    $region9: #{spatial_attention.1} parent=1 // pred_fallthru
      _
    // Predicated region
    $region10: #{spatial_attention.1} parent=1 // pred_check
      _
    $region11: #{spatial_attention.1} parent=1 // pred_check_branch
      %23 = sbr.rel (0) target = $region13
    $region12: #{spatial_attention.1} parent=1 // pred_region
      _
    $region13: #{spatial_attention.1} parent=1 // pred_fallthru
      _
    // Predicated region
    $region14: #{spatial_attention.1} parent=1 // pred_check
      _
    $region15: #{spatial_attention.1} parent=1 // pred_check_branch
      %25 = sbr.rel (0) target = $region17
    $region16: #{spatial_attention.1} parent=1 // pred_region
      _
    $region17: #{spatial_attention.1} parent=1 // pred_fallthru
      _
    // Predicated region
    $region18: #{spatial_attention.1} parent=1 // pred_check
      _
    $region19: #{spatial_attention.1} parent=1 // pred_check_branch
      %27 = sbr.rel (0) target = $region21
    $region20: #{spatial_attention.1} parent=1 // pred_region
      %28 = dma.done [#allocation3], 16
    $region21: #{spatial_attention.1} parent=1 // pred_fallthru
      _
    %29 = sfence
    %v30 = vld [vmem:[%s3] ss:$4 sm:$0x3]
    %s31 = scalar_lea.vmem %s3, 8
    %v32 = vld [vmem:[%s31] ss:$4 sm:$0x3]
    %s33 = scalar_lea.vmem %s3, 1
    %v34 = vld [vmem:[%s33] ss:$4 sm:$0x3]
    %s35 = scalar_lea.vmem %s3, 9
    %v36 = vld [vmem:[%s35] ss:$4 sm:$0x3]
    %s37 = scalar_lea.vmem %s3, 2
    %v38 = vld [vmem:[%s37] ss:$4 sm:$0x3]
    %s39 = scalar_lea.vmem %s3, 10
    %v40 = vld [vmem:[%s39] ss:$4 sm:$0x3]
    %v41 = vadd.f32 %v30, %v38
    %v42 = vadd.f32 %v32, %v40
    %v43 = vmax.f32 %v30, %v38
    %v44 = vmax.f32 %v32, %v40
    %s45 = scalar_lea.vmem %s3, 3
    %v46 = vld [vmem:[%s45] ss:$4 sm:$0x3]
    %s47 = scalar_lea.vmem %s3, 11
    %v48 = vld [vmem:[%s47] ss:$4 sm:$0x3]
    %v49 = vadd.f32 %v34, %v46
    %v50 = vadd.f32 %v36, %v48
    %v51 = vmax.f32 %v34, %v46
    %v52 = vmax.f32 %v36, %v48
    %v53 = vadd.f32 %v41, %v49
    %v54 = vadd.f32 %v42, %v50
    %v55 = vmax.f32 %v43, %v51
    %v56 = vmax.f32 %v44, %v52
    %v57 = vld [vmem:[%s1] sm:$0x3]
    %v58 = vlaneseq
    %v59 = vshrl.u32 %v58, 7
    %v60 = vsub.s32 0, %v59
    %v61 = vrot.slane %v57, %v60
    %v62 = vlaneseq
    %v63 = vshrl.u32 %v62, 7
    %v64 = vsub.s32 1, %v63
    %v65 = vrot.slane %v57, %v64
    %v66 = vld [vmem:[%s2] sm:$0x3]
    %v67 = vlaneseq
    %v68 = vshrl.u32 %v67, 7
    %v69 = vsub.s32 0, %v68
    %v70 = vrot.slane %v66, %v69
    %v71 = vlaneseq
    %v72 = vshrl.u32 %v71, 7
    %v73 = vsub.s32 1, %v72
    %v74 = vrot.slane %v66, %v73
    %vm75 = vcmp.ge.s32.totalorder %v61, 3
    %vm76 = vcmp.ge.s32.totalorder %v65, 3
    %vm77 = vcmp.ge.s32.totalorder %v61, 2
    %vm78 = vcmp.ge.s32.totalorder %v65, 2
    %vm79 = vcmp.ge.s32.totalorder %v61, 1
    %vm80 = vcmp.ge.s32.totalorder %v65, 1
    %vm81 = vcmp.lt.s32.totalorder %v61, 15
    %vm82 = vcmp.lt.s32.totalorder %v65, 15
    %vm83 = vcmp.lt.s32.totalorder %v61, 14
    %vm84 = vcmp.lt.s32.totalorder %v65, 14
    %vm85 = vcmp.lt.s32.totalorder %v61, 13
    %vm86 = vcmp.lt.s32.totalorder %v65, 13
    %vm87 = vcmp.ge.s32.totalorder %v70, 3
    %vm88 = vcmp.ge.s32.totalorder %v74, 3
    %vm89 = vcmp.ge.s32.totalorder %v70, 2
    %vm90 = vcmp.ge.s32.totalorder %v74, 2
    %vm91 = vcmp.ge.s32.totalorder %v70, 1
    %vm92 = vcmp.ge.s32.totalorder %v74, 1
    %vm93 = vcmp.lt.s32.totalorder %v70, 15
    %vm94 = vcmp.lt.s32.totalorder %v74, 15
    %vm95 = vcmp.lt.s32.totalorder %v70, 14
    %vm96 = vcmp.lt.s32.totalorder %v74, 14
    %vm97 = vcmp.lt.s32.totalorder %v70, 13
    %vm98 = vcmp.lt.s32.totalorder %v74, 13
    %v101 = vcombine.low %v53, %v54
    %v103 = vunpack.c.l.s4 1966171168
    %v104 = vunpack.c.0.s8 %v103
    %v105 = vlaneseq
    %v106 = vshrl.u32 %v105, 7
    %v107 = vsub.s32 %v104, %v106
    %v108 = vrot.slane %v101, %v107
    %v109 = vcombine.high %v108, %v108
    %v111 = vunpack.c.l.s4 1966171168
    %v112 = vunpack.c.0.s8 %v111
    %v113 = vlaneseq
    %v114 = vshrl.u32 %v113, 7
    %v115 = vsub.s32 %v112, %v114
    %v116 = vrot.slane %v108, %v115
    %v118 = vunpack.c.l.s4 1966171168
    %v119 = vunpack.c.0.s8 %v118
    %v120 = vlaneseq
    %v121 = vshrl.u32 %v120, 7
    %v122 = vsub.s32 %v119, %v121
    %v123 = vrot.slane %v109, %v122
    %126 = vrot.lane.b32.xlu0 %v116, 51
    %v127 = vpop.permute.xlu0 %126
    %128 = vrot.lane.b32.xlu0 %v123, 51
    %v129 = vpop.permute.xlu0 %128
    %v130 = vlaneseq
    %v131 = vand.u32 %v130, 127
    %vm132 = vcmp.lt.s32.totalorder %v131, 51
    %v133 = vsel %vm132, %v127, %v129
    %v134 = vsel %vm132, %v129, %v127
    %v137 = vcombine.low %v55, %v56
    %v139 = vunpack.c.l.s4 1966171168
    %v140 = vunpack.c.0.s8 %v139
    %v141 = vlaneseq
    %v142 = vshrl.u32 %v141, 7
    %v143 = vsub.s32 %v140, %v142
    %v144 = vrot.slane %v137, %v143
    %v145 = vcombine.high %v144, %v144
    %v147 = vunpack.c.l.s4 1966171168
    %v148 = vunpack.c.0.s8 %v147
    %v149 = vlaneseq
    %v150 = vshrl.u32 %v149, 7
    %v151 = vsub.s32 %v148, %v150
    %v152 = vrot.slane %v144, %v151
    %v154 = vunpack.c.l.s4 1966171168
    %v155 = vunpack.c.0.s8 %v154
    %v156 = vlaneseq
    %v157 = vshrl.u32 %v156, 7
    %v158 = vsub.s32 %v155, %v157
    %v159 = vrot.slane %v145, %v158
    %162 = vrot.lane.b32.xlu0 %v152, 51
    %v163 = vpop.permute.xlu0 %162
    %164 = vrot.lane.b32.xlu0 %v159, 51
    %v165 = vpop.permute.xlu0 %164
    %v166 = vsel %vm132, %v163, %v165
    %v167 = vsel %vm132, %v165, %v163
    %s168 = sld [smem:[#allocation2]]
    %s169 = sld [smem:[#allocation2 + $0x31]]
    %v170 = vstv %s168
    %v171 = vmul.f32 %v134, %v170
    %v172 = vmul.f32 %v133, %v170
    %v173 = vstv %s169
    %v174 = vmul.f32 %v167, %v173
    %v175 = vmul.f32 %v166, %v173
    %v176 = vadd.f32 %v171, %v174
    %v177 = vadd.f32 %v172, %v175
    %vm178 = vmand %vm75, %vm87
    %vm179 = vmand %vm76, %vm88
    %v180 = vsel %vm178, %v176, 0.0
    %v181 = vsel %vm179, %v177, 0.0
    %182 = vrot.lane.b32.xlu0 %v116, 50
    %v183 = vpop.permute.xlu0 %182
    %184 = vrot.lane.b32.xlu0 %v123, 50
    %v185 = vpop.permute.xlu0 %184
    %vm186 = vcmp.lt.s32.totalorder %v131, 50
    %v187 = vsel %vm186, %v183, %v185
    %v188 = vsel %vm186, %v185, %v183
    %189 = vrot.lane.b32.xlu0 %v152, 50
    %v190 = vpop.permute.xlu0 %189
    %191 = vrot.lane.b32.xlu0 %v159, 50
    %v192 = vpop.permute.xlu0 %191
    %v193 = vsel %vm186, %v190, %v192
    %v194 = vsel %vm186, %v192, %v190
    %s195 = sld [smem:[#allocation2 + $0x1]]
    %s196 = sld [smem:[#allocation2 + $0x32]]
    %v197 = vstv %s195
    %v198 = vmul.f32 %v188, %v197
    %v199 = vmul.f32 %v187, %v197
    %v200 = vstv %s196
    %v201 = vmul.f32 %v194, %v200
    %v202 = vmul.f32 %v193, %v200
    %v203 = vadd.f32 %v198, %v201
    %v204 = vadd.f32 %v199, %v202
    %vm205 = vmand %vm75, %vm89
    %vm206 = vmand %vm76, %vm90
    %v207 = vsel %vm205, %v203, 0.0
    %v208 = vsel %vm206, %v204, 0.0
    %v209 = vadd.f32 %v180, %v207
    %v210 = vadd.f32 %v181, %v208
    %211 = vrot.lane.b32.xlu0 %v116, 49
    %v212 = vpop.permute.xlu0 %211
    %213 = vrot.lane.b32.xlu0 %v123, 49
    %v214 = vpop.permute.xlu0 %213
    %vm215 = vcmp.lt.s32.totalorder %v131, 49
    %v216 = vsel %vm215, %v212, %v214
    %v217 = vsel %vm215, %v214, %v212
    %218 = vrot.lane.b32.xlu0 %v152, 49
    %v219 = vpop.permute.xlu0 %218
    %220 = vrot.lane.b32.xlu0 %v159, 49
    %v221 = vpop.permute.xlu0 %220
    %v222 = vsel %vm215, %v219, %v221
    %v223 = vsel %vm215, %v221, %v219
    %s224 = sld [smem:[#allocation2 + $0x2]]
    %s225 = sld [smem:[#allocation2 + $0x33]]
    %v226 = vstv %s224
    %v227 = vmul.f32 %v217, %v226
    %v228 = vmul.f32 %v216, %v226
    %v229 = vstv %s225
    %v230 = vmul.f32 %v223, %v229
    %v231 = vmul.f32 %v222, %v229
    %v232 = vadd.f32 %v227, %v230
    %v233 = vadd.f32 %v228, %v231
    %vm234 = vmand %vm75, %vm91
    %vm235 = vmand %vm76, %vm92
    %v236 = vsel %vm234, %v232, 0.0
    %v237 = vsel %vm235, %v233, 0.0
    %v238 = vadd.f32 %v209, %v236
    %v239 = vadd.f32 %v210, %v237
    %240 = vrot.lane.b32.xlu0 %v116, 48
    %v241 = vpop.permute.xlu0 %240
    %242 = vrot.lane.b32.xlu0 %v123, 48
    %v243 = vpop.permute.xlu0 %242
    %vm244 = vcmp.lt.s32.totalorder %v131, 48
    %v245 = vsel %vm244, %v241, %v243
    %v246 = vsel %vm244, %v243, %v241
    %247 = vrot.lane.b32.xlu0 %v152, 48
    %v248 = vpop.permute.xlu0 %247
    %249 = vrot.lane.b32.xlu0 %v159, 48
    %v250 = vpop.permute.xlu0 %249
    %v251 = vsel %vm244, %v248, %v250
    %v252 = vsel %vm244, %v250, %v248
    %s253 = sld [smem:[#allocation2 + $0x3]]
    %s254 = sld [smem:[#allocation2 + $0x34]]
    %v255 = vstv %s253
    %v256 = vmul.f32 %v246, %v255
    %v257 = vmul.f32 %v245, %v255
    %v258 = vstv %s254
    %v259 = vmul.f32 %v252, %v258
    %v260 = vmul.f32 %v251, %v258
    %v261 = vadd.f32 %v256, %v259
    %v262 = vadd.f32 %v257, %v260
    %v263 = vsel %vm75, %v261, 0.0
    %v264 = vsel %vm76, %v262, 0.0
    %v265 = vadd.f32 %v238, %v263
    %v266 = vadd.f32 %v239, %v264
    %267 = vrot.lane.b32.xlu0 %v116, 47
    %v268 = vpop.permute.xlu0 %267
    %269 = vrot.lane.b32.xlu0 %v123, 47
    %v270 = vpop.permute.xlu0 %269
    %vm271 = vcmp.lt.s32.totalorder %v131, 47
    %v272 = vsel %vm271, %v268, %v270
    %v273 = vsel %vm271, %v270, %v268
    %274 = vrot.lane.b32.xlu0 %v152, 47
    %v275 = vpop.permute.xlu0 %274
    %276 = vrot.lane.b32.xlu0 %v159, 47
    %v277 = vpop.permute.xlu0 %276
    %v278 = vsel %vm271, %v275, %v277
    %v279 = vsel %vm271, %v277, %v275
    %s280 = sld [smem:[#allocation2 + $0x4]]
    %s281 = sld [smem:[#allocation2 + $0x35]]
    %v282 = vstv %s280
    %v283 = vmul.f32 %v273, %v282
    %v284 = vmul.f32 %v272, %v282
    %v285 = vstv %s281
    %v286 = vmul.f32 %v279, %v285
    %v287 = vmul.f32 %v278, %v285
    %v288 = vadd.f32 %v283, %v286
    %v289 = vadd.f32 %v284, %v287
    %vm290 = vmand %vm75, %vm93
    %vm291 = vmand %vm76, %vm94
    %v292 = vsel %vm290, %v288, 0.0
    %v293 = vsel %vm291, %v289, 0.0
    %v294 = vadd.f32 %v265, %v292
    %v295 = vadd.f32 %v266, %v293
    %296 = vrot.lane.b32.xlu0 %v116, 46
    %v297 = vpop.permute.xlu0 %296
    %298 = vrot.lane.b32.xlu0 %v123, 46
    %v299 = vpop.permute.xlu0 %298
    %vm300 = vcmp.lt.s32.totalorder %v131, 46
    %v301 = vsel %vm300, %v297, %v299
    %v302 = vsel %vm300, %v299, %v297
    %303 = vrot.lane.b32.xlu0 %v152, 46
    %v304 = vpop.permute.xlu0 %303
    %305 = vrot.lane.b32.xlu0 %v159, 46
    %v306 = vpop.permute.xlu0 %305
    %v307 = vsel %vm300, %v304, %v306
    %v308 = vsel %vm300, %v306, %v304
    %s309 = sld [smem:[#allocation2 + $0x5]]
    %s310 = sld [smem:[#allocation2 + $0x36]]
    %v311 = vstv %s309
    %v312 = vmul.f32 %v302, %v311
    %v313 = vmul.f32 %v301, %v311
    %v314 = vstv %s310
    %v315 = vmul.f32 %v308, %v314
    %v316 = vmul.f32 %v307, %v314
    %v317 = vadd.f32 %v312, %v315
    %v318 = vadd.f32 %v313, %v316
    %vm319 = vmand %vm75, %vm95
    %vm320 = vmand %vm76, %vm96
    %v321 = vsel %vm319, %v317, 0.0
    %v322 = vsel %vm320, %v318, 0.0
    %v323 = vadd.f32 %v294, %v321
    %v324 = vadd.f32 %v295, %v322
    %325 = vrot.lane.b32.xlu0 %v116, 45
    %v326 = vpop.permute.xlu0 %325
    %327 = vrot.lane.b32.xlu0 %v123, 45
    %v328 = vpop.permute.xlu0 %327
    %vm329 = vcmp.lt.s32.totalorder %v131, 45
    %v330 = vsel %vm329, %v326, %v328
    %v331 = vsel %vm329, %v328, %v326
    %332 = vrot.lane.b32.xlu0 %v152, 45
    %v333 = vpop.permute.xlu0 %332
    %334 = vrot.lane.b32.xlu0 %v159, 45
    %v335 = vpop.permute.xlu0 %334
    %v336 = vsel %vm329, %v333, %v335
    %v337 = vsel %vm329, %v335, %v333
    %s338 = sld [smem:[#allocation2 + $0x6]]
    %s339 = sld [smem:[#allocation2 + $0x37]]
    %v340 = vstv %s338
    %v341 = vmul.f32 %v331, %v340
    %v342 = vmul.f32 %v330, %v340
    %v343 = vstv %s339
    %v344 = vmul.f32 %v337, %v343
    %v345 = vmul.f32 %v336, %v343
    %v346 = vadd.f32 %v341, %v344
    %v347 = vadd.f32 %v342, %v345
    %vm348 = vmand %vm75, %vm97
    %vm349 = vmand %vm76, %vm98
    %v350 = vsel %vm348, %v346, 0.0
    %v351 = vsel %vm349, %v347, 0.0
    %v352 = vadd.f32 %v323, %v350
    %v353 = vadd.f32 %v324, %v351
    %354 = vrot.lane.b32.xlu0 %v116, 35
    %v355 = vpop.permute.xlu0 %354
    %356 = vrot.lane.b32.xlu0 %v123, 35
    %v357 = vpop.permute.xlu0 %356
    %vm358 = vcmp.lt.s32.totalorder %v131, 35
    %v359 = vsel %vm358, %v355, %v357
    %v360 = vsel %vm358, %v357, %v355
    %361 = vrot.lane.b32.xlu0 %v152, 35
    %v362 = vpop.permute.xlu0 %361
    %363 = vrot.lane.b32.xlu0 %v159, 35
    %v364 = vpop.permute.xlu0 %363
    %v365 = vsel %vm358, %v362, %v364
    %v366 = vsel %vm358, %v364, %v362
    %s367 = sld [smem:[#allocation2 + $0x7]]
    %s368 = sld [smem:[#allocation2 + $0x38]]
    %v369 = vstv %s367
    %v370 = vmul.f32 %v360, %v369
    %v371 = vmul.f32 %v359, %v369
    %v372 = vstv %s368
    %v373 = vmul.f32 %v366, %v372
    %v374 = vmul.f32 %v365, %v372
    %v375 = vadd.f32 %v370, %v373
    %v376 = vadd.f32 %v371, %v374
    %vm377 = vmand %vm77, %vm87
    %vm378 = vmand %vm78, %vm88
    %v379 = vsel %vm377, %v375, 0.0
    %v380 = vsel %vm378, %v376, 0.0
    %381 = vrot.lane.b32.xlu0 %v116, 34
    %v382 = vpop.permute.xlu0 %381
    %383 = vrot.lane.b32.xlu0 %v123, 34
    %v384 = vpop.permute.xlu0 %383
    %vm385 = vcmp.lt.s32.totalorder %v131, 34
    %v386 = vsel %vm385, %v382, %v384
    %v387 = vsel %vm385, %v384, %v382
    %388 = vrot.lane.b32.xlu0 %v152, 34
    %v389 = vpop.permute.xlu0 %388
    %390 = vrot.lane.b32.xlu0 %v159, 34
    %v391 = vpop.permute.xlu0 %390
    %v392 = vsel %vm385, %v389, %v391
    %v393 = vsel %vm385, %v391, %v389
    %s394 = sld [smem:[#allocation2 + $0x8]]
    %s395 = sld [smem:[#allocation2 + $0x39]]
    %v396 = vstv %s394
    %v397 = vmul.f32 %v387, %v396
    %v398 = vmul.f32 %v386, %v396
    %v399 = vstv %s395
    %v400 = vmul.f32 %v393, %v399
    %v401 = vmul.f32 %v392, %v399
    %v402 = vadd.f32 %v397, %v400
    %v403 = vadd.f32 %v398, %v401
    %vm404 = vmand %vm77, %vm89
    %vm405 = vmand %vm78, %vm90
    %v406 = vsel %vm404, %v402, 0.0
    %v407 = vsel %vm405, %v403, 0.0
    %v408 = vadd.f32 %v379, %v406
    %v409 = vadd.f32 %v380, %v407
    %410 = vrot.lane.b32.xlu0 %v116, 33
    %v411 = vpop.permute.xlu0 %410
    %412 = vrot.lane.b32.xlu0 %v123, 33
    %v413 = vpop.permute.xlu0 %412
    %vm414 = vcmp.lt.s32.totalorder %v131, 33
    %v415 = vsel %vm414, %v411, %v413
    %v416 = vsel %vm414, %v413, %v411
    %417 = vrot.lane.b32.xlu0 %v152, 33
    %v418 = vpop.permute.xlu0 %417
    %419 = vrot.lane.b32.xlu0 %v159, 33
    %v420 = vpop.permute.xlu0 %419
    %v421 = vsel %vm414, %v418, %v420
    %v422 = vsel %vm414, %v420, %v418
    %s423 = sld [smem:[#allocation2 + $0x9]]
    %s424 = sld [smem:[#allocation2 + $0x3a]]
    %v425 = vstv %s423
    %v426 = vmul.f32 %v416, %v425
    %v427 = vmul.f32 %v415, %v425
    %v428 = vstv %s424
    %v429 = vmul.f32 %v422, %v428
    %v430 = vmul.f32 %v421, %v428
    %v431 = vadd.f32 %v426, %v429
    %v432 = vadd.f32 %v427, %v430
    %vm433 = vmand %vm77, %vm91
    %vm434 = vmand %vm78, %vm92
    %v435 = vsel %vm433, %v431, 0.0
    %v436 = vsel %vm434, %v432, 0.0
    %v437 = vadd.f32 %v408, %v435
    %v438 = vadd.f32 %v409, %v436
    %439 = vrot.lane.b32.xlu0 %v116, 32
    %v440 = vpop.permute.xlu0 %439
    %441 = vrot.lane.b32.xlu0 %v123, 32
    %v442 = vpop.permute.xlu0 %441
    %vm443 = vcmp.lt.s32.totalorder %v131, 32
    %v444 = vsel %vm443, %v440, %v442
    %v445 = vsel %vm443, %v442, %v440
    %446 = vrot.lane.b32.xlu0 %v152, 32
    %v447 = vpop.permute.xlu0 %446
    %448 = vrot.lane.b32.xlu0 %v159, 32
    %v449 = vpop.permute.xlu0 %448
    %v450 = vsel %vm443, %v447, %v449
    %v451 = vsel %vm443, %v449, %v447
    %s452 = sld [smem:[#allocation2 + $0xa]]
    %s453 = sld [smem:[#allocation2 + $0x3b]]
    %v454 = vstv %s452
    %v455 = vmul.f32 %v445, %v454
    %v456 = vmul.f32 %v444, %v454
    %v457 = vstv %s453
    %v458 = vmul.f32 %v451, %v457
    %v459 = vmul.f32 %v450, %v457
    %v460 = vadd.f32 %v455, %v458
    %v461 = vadd.f32 %v456, %v459
    %v462 = vsel %vm77, %v460, 0.0
    %v463 = vsel %vm78, %v461, 0.0
    %v464 = vadd.f32 %v437, %v462
    %v465 = vadd.f32 %v438, %v463
    %466 = vrot.lane.b32.xlu0 %v116, 31
    %v467 = vpop.permute.xlu0 %466
    %468 = vrot.lane.b32.xlu0 %v123, 31
    %v469 = vpop.permute.xlu0 %468
    %vm470 = vcmp.lt.s32.totalorder %v131, 31
    %v471 = vsel %vm470, %v467, %v469
    %v472 = vsel %vm470, %v469, %v467
    %473 = vrot.lane.b32.xlu0 %v152, 31
    %v474 = vpop.permute.xlu0 %473
    %475 = vrot.lane.b32.xlu0 %v159, 31
    %v476 = vpop.permute.xlu0 %475
    %v477 = vsel %vm470, %v474, %v476
    %v478 = vsel %vm470, %v476, %v474
    %s479 = sld [smem:[#allocation2 + $0xb]]
    %s480 = sld [smem:[#allocation2 + $0x3c]]
    %v481 = vstv %s479
    %v482 = vmul.f32 %v472, %v481
    %v483 = vmul.f32 %v471, %v481
    %v484 = vstv %s480
    %v485 = vmul.f32 %v478, %v484
    %v486 = vmul.f32 %v477, %v484
    %v487 = vadd.f32 %v482, %v485
    %v488 = vadd.f32 %v483, %v486
    %vm489 = vmand %vm77, %vm93
    %vm490 = vmand %vm78, %vm94
    %v491 = vsel %vm489, %v487, 0.0
    %v492 = vsel %vm490, %v488, 0.0
    %v493 = vadd.f32 %v464, %v491
    %v494 = vadd.f32 %v465, %v492
    %495 = vrot.lane.b32.xlu0 %v116, 30
    %v496 = vpop.permute.xlu0 %495
    %497 = vrot.lane.b32.xlu0 %v123, 30
    %v498 = vpop.permute.xlu0 %497
    %vm499 = vcmp.lt.s32.totalorder %v131, 30
    %v500 = vsel %vm499, %v496, %v498
    %v501 = vsel %vm499, %v498, %v496
    %502 = vrot.lane.b32.xlu0 %v152, 30
    %v503 = vpop.permute.xlu0 %502
    %504 = vrot.lane.b32.xlu0 %v159, 30
    %v505 = vpop.permute.xlu0 %504
    %v506 = vsel %vm499, %v503, %v505
    %v507 = vsel %vm499, %v505, %v503
    %s508 = sld [smem:[#allocation2 + $0xc]]
    %s509 = sld [smem:[#allocation2 + $0x3d]]
    %v510 = vstv %s508
    %v511 = vmul.f32 %v501, %v510
    %v512 = vmul.f32 %v500, %v510
    %v513 = vstv %s509
    %v514 = vmul.f32 %v507, %v513
    %v515 = vmul.f32 %v506, %v513
    %v516 = vadd.f32 %v511, %v514
    %v517 = vadd.f32 %v512, %v515
    %vm518 = vmand %vm77, %vm95
    %vm519 = vmand %vm78, %vm96
    %v520 = vsel %vm518, %v516, 0.0
    %v521 = vsel %vm519, %v517, 0.0
    %v522 = vadd.f32 %v493, %v520
    %v523 = vadd.f32 %v494, %v521
    %524 = vrot.lane.b32.xlu0 %v116, 29
    %v525 = vpop.permute.xlu0 %524
    %526 = vrot.lane.b32.xlu0 %v123, 29
    %v527 = vpop.permute.xlu0 %526
    %vm528 = vcmp.lt.s32.totalorder %v131, 29
    %v529 = vsel %vm528, %v525, %v527
    %v530 = vsel %vm528, %v527, %v525
    %531 = vrot.lane.b32.xlu0 %v152, 29
    %v532 = vpop.permute.xlu0 %531
    %533 = vrot.lane.b32.xlu0 %v159, 29
    %v534 = vpop.permute.xlu0 %533
    %v535 = vsel %vm528, %v532, %v534
    %v536 = vsel %vm528, %v534, %v532
    %s537 = sld [smem:[#allocation2 + $0xd]]
    %s538 = sld [smem:[#allocation2 + $0x3e]]
    %v539 = vstv %s537
    %v540 = vmul.f32 %v530, %v539
    %v541 = vmul.f32 %v529, %v539
    %v542 = vstv %s538
    %v543 = vmul.f32 %v536, %v542
    %v544 = vmul.f32 %v535, %v542
    %v545 = vadd.f32 %v540, %v543
    %v546 = vadd.f32 %v541, %v544
    %vm547 = vmand %vm77, %vm97
    %vm548 = vmand %vm78, %vm98
    %v549 = vsel %vm547, %v545, 0.0
    %v550 = vsel %vm548, %v546, 0.0
    %v551 = vadd.f32 %v522, %v549
    %v552 = vadd.f32 %v523, %v550
    %553 = vrot.lane.b32.xlu0 %v116, 19
    %v554 = vpop.permute.xlu0 %553
    %555 = vrot.lane.b32.xlu0 %v123, 19
    %v556 = vpop.permute.xlu0 %555
    %vm557 = vcmp.lt.s32.totalorder %v131, 19
    %v558 = vsel %vm557, %v554, %v556
    %v559 = vsel %vm557, %v556, %v554
    %560 = vrot.lane.b32.xlu0 %v152, 19
    %v561 = vpop.permute.xlu0 %560
    %562 = vrot.lane.b32.xlu0 %v159, 19
    %v563 = vpop.permute.xlu0 %562
    %v564 = vsel %vm557, %v561, %v563
    %v565 = vsel %vm557, %v563, %v561
    %s566 = sld [smem:[#allocation2 + $0xe]]
    %s567 = sld [smem:[#allocation2 + $0x3f]]
    %v568 = vstv %s566
    %v569 = vmul.f32 %v559, %v568
    %v570 = vmul.f32 %v558, %v568
    %v571 = vstv %s567
    %v572 = vmul.f32 %v565, %v571
    %v573 = vmul.f32 %v564, %v571
    %v574 = vadd.f32 %v569, %v572
    %v575 = vadd.f32 %v570, %v573
    %vm576 = vmand %vm79, %vm87
    %vm577 = vmand %vm80, %vm88
    %v578 = vsel %vm576, %v574, 0.0
    %v579 = vsel %vm577, %v575, 0.0
    %580 = vrot.lane.b32.xlu0 %v116, 18
    %v581 = vpop.permute.xlu0 %580
    %582 = vrot.lane.b32.xlu0 %v123, 18
    %v583 = vpop.permute.xlu0 %582
    %vm584 = vcmp.lt.s32.totalorder %v131, 18
    %v585 = vsel %vm584, %v581, %v583
    %v586 = vsel %vm584, %v583, %v581
    %587 = vrot.lane.b32.xlu0 %v152, 18
    %v588 = vpop.permute.xlu0 %587
    %589 = vrot.lane.b32.xlu0 %v159, 18
    %v590 = vpop.permute.xlu0 %589
    %v591 = vsel %vm584, %v588, %v590
    %v592 = vsel %vm584, %v590, %v588
    %s593 = sld [smem:[#allocation2 + $0xf]]
    %s594 = sld [smem:[#allocation2 + $0x40]]
    %v595 = vstv %s593
    %v596 = vmul.f32 %v586, %v595
    %v597 = vmul.f32 %v585, %v595
    %v598 = vstv %s594
    %v599 = vmul.f32 %v592, %v598
    %v600 = vmul.f32 %v591, %v598
    %v601 = vadd.f32 %v596, %v599
    %v602 = vadd.f32 %v597, %v600
    %vm603 = vmand %vm79, %vm89
    %vm604 = vmand %vm80, %vm90
    %v605 = vsel %vm603, %v601, 0.0
    %v606 = vsel %vm604, %v602, 0.0
    %v607 = vadd.f32 %v578, %v605
    %v608 = vadd.f32 %v579, %v606
    %609 = vrot.lane.b32.xlu0 %v116, 17
    %v610 = vpop.permute.xlu0 %609
    %611 = vrot.lane.b32.xlu0 %v123, 17
    %v612 = vpop.permute.xlu0 %611
    %vm613 = vcmp.lt.s32.totalorder %v131, 17
    %v614 = vsel %vm613, %v610, %v612
    %v615 = vsel %vm613, %v612, %v610
    %616 = vrot.lane.b32.xlu0 %v152, 17
    %v617 = vpop.permute.xlu0 %616
    %618 = vrot.lane.b32.xlu0 %v159, 17
    %v619 = vpop.permute.xlu0 %618
    %v620 = vsel %vm613, %v617, %v619
    %v621 = vsel %vm613, %v619, %v617
    %s622 = sld [smem:[#allocation2 + $0x10]]
    %s623 = sld [smem:[#allocation2 + $0x41]]
    %v624 = vstv %s622
    %v625 = vmul.f32 %v615, %v624
    %v626 = vmul.f32 %v614, %v624
    %v627 = vstv %s623
    %v628 = vmul.f32 %v621, %v627
    %v629 = vmul.f32 %v620, %v627
    %v630 = vadd.f32 %v625, %v628
    %v631 = vadd.f32 %v626, %v629
    %vm632 = vmand %vm79, %vm91
    %vm633 = vmand %vm80, %vm92
    %v634 = vsel %vm632, %v630, 0.0
    %v635 = vsel %vm633, %v631, 0.0
    %v636 = vadd.f32 %v607, %v634
    %v637 = vadd.f32 %v608, %v635
    %638 = vrot.lane.b32.xlu0 %v116, 16
    %v639 = vpop.permute.xlu0 %638
    %640 = vrot.lane.b32.xlu0 %v123, 16
    %v641 = vpop.permute.xlu0 %640
    %vm642 = vcmp.lt.s32.totalorder %v131, 16
    %v643 = vsel %vm642, %v639, %v641
    %v644 = vsel %vm642, %v641, %v639
    %645 = vrot.lane.b32.xlu0 %v152, 16
    %v646 = vpop.permute.xlu0 %645
    %647 = vrot.lane.b32.xlu0 %v159, 16
    %v648 = vpop.permute.xlu0 %647
    %v649 = vsel %vm642, %v646, %v648
    %v650 = vsel %vm642, %v648, %v646
    %s651 = sld [smem:[#allocation2 + $0x11]]
    %s652 = sld [smem:[#allocation2 + $0x42]]
    %v653 = vstv %s651
    %v654 = vmul.f32 %v644, %v653
    %v655 = vmul.f32 %v643, %v653
    %v656 = vstv %s652
    %v657 = vmul.f32 %v650, %v656
    %v658 = vmul.f32 %v649, %v656
    %v659 = vadd.f32 %v654, %v657
    %v660 = vadd.f32 %v655, %v658
    %v661 = vsel %vm79, %v659, 0.0
    %v662 = vsel %vm80, %v660, 0.0
    %v663 = vadd.f32 %v636, %v661
    %v664 = vadd.f32 %v637, %v662
    %665 = vrot.lane.b32.xlu0 %v116, 15
    %v666 = vpop.permute.xlu0 %665
    %667 = vrot.lane.b32.xlu0 %v123, 15
    %v668 = vpop.permute.xlu0 %667
    %vm669 = vcmp.lt.s32.totalorder %v131, 15
    %v670 = vsel %vm669, %v666, %v668
    %v671 = vsel %vm669, %v668, %v666
    %672 = vrot.lane.b32.xlu0 %v152, 15
    %v673 = vpop.permute.xlu0 %672
    %674 = vrot.lane.b32.xlu0 %v159, 15
    %v675 = vpop.permute.xlu0 %674
    %v676 = vsel %vm669, %v673, %v675
    %v677 = vsel %vm669, %v675, %v673
    %s678 = sld [smem:[#allocation2 + $0x12]]
    %s679 = sld [smem:[#allocation2 + $0x43]]
    %v680 = vstv %s678
    %v681 = vmul.f32 %v671, %v680
    %v682 = vmul.f32 %v670, %v680
    %v683 = vstv %s679
    %v684 = vmul.f32 %v677, %v683
    %v685 = vmul.f32 %v676, %v683
    %v686 = vadd.f32 %v681, %v684
    %v687 = vadd.f32 %v682, %v685
    %vm688 = vmand %vm79, %vm93
    %vm689 = vmand %vm80, %vm94
    %v690 = vsel %vm688, %v686, 0.0
    %v691 = vsel %vm689, %v687, 0.0
    %v692 = vadd.f32 %v663, %v690
    %v693 = vadd.f32 %v664, %v691
    %694 = vrot.lane.b32.xlu0 %v116, 14
    %v695 = vpop.permute.xlu0 %694
    %696 = vrot.lane.b32.xlu0 %v123, 14
    %v697 = vpop.permute.xlu0 %696
    %vm698 = vcmp.lt.s32.totalorder %v131, 14
    %v699 = vsel %vm698, %v695, %v697
    %v700 = vsel %vm698, %v697, %v695
    %701 = vrot.lane.b32.xlu0 %v152, 14
    %v702 = vpop.permute.xlu0 %701
    %703 = vrot.lane.b32.xlu0 %v159, 14
    %v704 = vpop.permute.xlu0 %703
    %v705 = vsel %vm698, %v702, %v704
    %v706 = vsel %vm698, %v704, %v702
    %s707 = sld [smem:[#allocation2 + $0x13]]
    %s708 = sld [smem:[#allocation2 + $0x44]]
    %v709 = vstv %s707
    %v710 = vmul.f32 %v700, %v709
    %v711 = vmul.f32 %v699, %v709
    %v712 = vstv %s708
    %v713 = vmul.f32 %v706, %v712
    %v714 = vmul.f32 %v705, %v712
    %v715 = vadd.f32 %v710, %v713
    %v716 = vadd.f32 %v711, %v714
    %vm717 = vmand %vm79, %vm95
    %vm718 = vmand %vm80, %vm96
    %v719 = vsel %vm717, %v715, 0.0
    %v720 = vsel %vm718, %v716, 0.0
    %v721 = vadd.f32 %v692, %v719
    %v722 = vadd.f32 %v693, %v720
    %723 = vrot.lane.b32.xlu0 %v116, 13
    %v724 = vpop.permute.xlu0 %723
    %725 = vrot.lane.b32.xlu0 %v123, 13
    %v726 = vpop.permute.xlu0 %725
    %vm727 = vcmp.lt.s32.totalorder %v131, 13
    %v728 = vsel %vm727, %v724, %v726
    %v729 = vsel %vm727, %v726, %v724
    %730 = vrot.lane.b32.xlu0 %v152, 13
    %v731 = vpop.permute.xlu0 %730
    %732 = vrot.lane.b32.xlu0 %v159, 13
    %v733 = vpop.permute.xlu0 %732
    %v734 = vsel %vm727, %v731, %v733
    %v735 = vsel %vm727, %v733, %v731
    %s736 = sld [smem:[#allocation2 + $0x14]]
    %s737 = sld [smem:[#allocation2 + $0x45]]
    %v738 = vstv %s736
    %v739 = vmul.f32 %v729, %v738
    %v740 = vmul.f32 %v728, %v738
    %v741 = vstv %s737
    %v742 = vmul.f32 %v735, %v741
    %v743 = vmul.f32 %v734, %v741
    %v744 = vadd.f32 %v739, %v742
    %v745 = vadd.f32 %v740, %v743
    %vm746 = vmand %vm79, %vm97
    %vm747 = vmand %vm80, %vm98
    %v748 = vsel %vm746, %v744, 0.0
    %v749 = vsel %vm747, %v745, 0.0
    %v750 = vadd.f32 %v721, %v748
    %v751 = vadd.f32 %v722, %v749
    %752 = vrot.lane.b32.xlu0 %v116, 3
    %v753 = vpop.permute.xlu0 %752
    %754 = vrot.lane.b32.xlu0 %v123, 3
    %v755 = vpop.permute.xlu0 %754
    %vm756 = vcmp.lt.s32.totalorder %v131, 3
    %v757 = vsel %vm756, %v753, %v755
    %v758 = vsel %vm756, %v755, %v753
    %759 = vrot.lane.b32.xlu0 %v152, 3
    %v760 = vpop.permute.xlu0 %759
    %761 = vrot.lane.b32.xlu0 %v159, 3
    %v762 = vpop.permute.xlu0 %761
    %v763 = vsel %vm756, %v760, %v762
    %v764 = vsel %vm756, %v762, %v760
    %s765 = sld [smem:[#allocation2 + $0x15]]
    %s766 = sld [smem:[#allocation2 + $0x46]]
    %v767 = vstv %s765
    %v768 = vmul.f32 %v758, %v767
    %v769 = vmul.f32 %v757, %v767
    %v770 = vstv %s766
    %v771 = vmul.f32 %v764, %v770
    %v772 = vmul.f32 %v763, %v770
    %v773 = vadd.f32 %v768, %v771
    %v774 = vadd.f32 %v769, %v772
    %v775 = vsel %vm87, %v773, 0.0
    %v776 = vsel %vm88, %v774, 0.0
    %777 = vrot.lane.b32.xlu0 %v116, 2
    %v778 = vpop.permute.xlu0 %777
    %779 = vrot.lane.b32.xlu0 %v123, 2
    %v780 = vpop.permute.xlu0 %779
    %vm781 = vcmp.lt.s32.totalorder %v131, 2
    %v782 = vsel %vm781, %v778, %v780
    %v783 = vsel %vm781, %v780, %v778
    %784 = vrot.lane.b32.xlu0 %v152, 2
    %v785 = vpop.permute.xlu0 %784
    %786 = vrot.lane.b32.xlu0 %v159, 2
    %v787 = vpop.permute.xlu0 %786
    %v788 = vsel %vm781, %v785, %v787
    %v789 = vsel %vm781, %v787, %v785
    %s790 = sld [smem:[#allocation2 + $0x16]]
    %s791 = sld [smem:[#allocation2 + $0x47]]
    %v792 = vstv %s790
    %v793 = vmul.f32 %v783, %v792
    %v794 = vmul.f32 %v782, %v792
    %v795 = vstv %s791
    %v796 = vmul.f32 %v789, %v795
    %v797 = vmul.f32 %v788, %v795
    %v798 = vadd.f32 %v793, %v796
    %v799 = vadd.f32 %v794, %v797
    %v800 = vsel %vm89, %v798, 0.0
    %v801 = vsel %vm90, %v799, 0.0
    %v802 = vadd.f32 %v775, %v800
    %v803 = vadd.f32 %v776, %v801
    %804 = vrot.lane.b32.xlu0 %v116, 1
    %v805 = vpop.permute.xlu0 %804
    %806 = vrot.lane.b32.xlu0 %v123, 1
    %v807 = vpop.permute.xlu0 %806
    %vm808 = vcmp.lt.s32.totalorder %v131, 1
    %v809 = vsel %vm808, %v805, %v807
    %v810 = vsel %vm808, %v807, %v805
    %811 = vrot.lane.b32.xlu0 %v152, 1
    %v812 = vpop.permute.xlu0 %811
    %813 = vrot.lane.b32.xlu0 %v159, 1
    %v814 = vpop.permute.xlu0 %813
    %v815 = vsel %vm808, %v812, %v814
    %v816 = vsel %vm808, %v814, %v812
    %s817 = sld [smem:[#allocation2 + $0x17]]
    %s818 = sld [smem:[#allocation2 + $0x48]]
    %v819 = vstv %s817
    %v820 = vmul.f32 %v810, %v819
    %v821 = vmul.f32 %v809, %v819
    %v822 = vstv %s818
    %v823 = vmul.f32 %v816, %v822
    %v824 = vmul.f32 %v815, %v822
    %v825 = vadd.f32 %v820, %v823
    %v826 = vadd.f32 %v821, %v824
    %v827 = vsel %vm91, %v825, 0.0
    %v828 = vsel %vm92, %v826, 0.0
    %v829 = vadd.f32 %v802, %v827
    %v830 = vadd.f32 %v803, %v828
    %s831 = sld [smem:[#allocation2 + $0x18]]
    %s832 = sld [smem:[#allocation2 + $0x49]]
    %v833 = vstv %s831
    %v834 = vmul.f32 %v53, %v833
    %v835 = vmul.f32 %v54, %v833
    %v836 = vstv %s832
    %v837 = vmul.f32 %v55, %v836
    %v838 = vmul.f32 %v56, %v836
    %v839 = vadd.f32 %v834, %v837
    %v840 = vadd.f32 %v835, %v838
    %v843 = vcombine.low %v839, %v840
    %v845 = vunpack.c.l.s4 1966171168
    %v846 = vunpack.c.0.s8 %v845
    %v847 = vlaneseq
    %v848 = vshrl.u32 %v847, 7
    %v849 = vsub.s32 %v846, %v848
    %v850 = vrot.slane %v843, %v849
    %v851 = vcombine.high %v850, %v850
    %v853 = vunpack.c.l.s4 1966171168
    %v854 = vunpack.c.0.s8 %v853
    %v855 = vlaneseq
    %v856 = vshrl.u32 %v855, 7
    %v857 = vsub.s32 %v854, %v856
    %v858 = vrot.slane %v850, %v857
    %v860 = vunpack.c.l.s4 1966171168
    %v861 = vunpack.c.0.s8 %v860
    %v862 = vlaneseq
    %v863 = vshrl.u32 %v862, 7
    %v864 = vsub.s32 %v861, %v863
    %v865 = vrot.slane %v851, %v864
    %v868 = vadd.f32 %v829, %v858
    %v869 = vadd.f32 %v830, %v865
    %870 = vrot.lane.b32.xlu0 %v116, 127
    %v871 = vpop.permute.xlu0 %870
    %872 = vrot.lane.b32.xlu0 %v123, 127
    %v873 = vpop.permute.xlu0 %872
    %vm874 = vcmp.lt.s32.totalorder %v131, 127
    %v875 = vsel %vm874, %v871, %v873
    %v876 = vsel %vm874, %v873, %v871
    %877 = vrot.lane.b32.xlu0 %v152, 127
    %v878 = vpop.permute.xlu0 %877
    %879 = vrot.lane.b32.xlu0 %v159, 127
    %v880 = vpop.permute.xlu0 %879
    %v881 = vsel %vm874, %v878, %v880
    %v882 = vsel %vm874, %v880, %v878
    %s883 = sld [smem:[#allocation2 + $0x19]]
    %s884 = sld [smem:[#allocation2 + $0x4a]]
    %v885 = vstv %s883
    %v886 = vmul.f32 %v875, %v885
    %v887 = vmul.f32 %v876, %v885
    %v888 = vstv %s884
    %v889 = vmul.f32 %v881, %v888
    %v890 = vmul.f32 %v882, %v888
    %v891 = vadd.f32 %v886, %v889
    %v892 = vadd.f32 %v887, %v890
    %v893 = vsel %vm93, %v891, 0.0
    %v894 = vsel %vm94, %v892, 0.0
    %v895 = vadd.f32 %v868, %v893
    %v896 = vadd.f32 %v869, %v894
    %897 = vrot.lane.b32.xlu0 %v116, 126
    %v898 = vpop.permute.xlu0 %897
    %899 = vrot.lane.b32.xlu0 %v123, 126
    %v900 = vpop.permute.xlu0 %899
    %vm901 = vcmp.lt.s32.totalorder %v131, 126
    %v902 = vsel %vm901, %v898, %v900
    %v903 = vsel %vm901, %v900, %v898
    %904 = vrot.lane.b32.xlu0 %v152, 126
    %v905 = vpop.permute.xlu0 %904
    %906 = vrot.lane.b32.xlu0 %v159, 126
    %v907 = vpop.permute.xlu0 %906
    %v908 = vsel %vm901, %v905, %v907
    %v909 = vsel %vm901, %v907, %v905
    %s910 = sld [smem:[#allocation2 + $0x1a]]
    %s911 = sld [smem:[#allocation2 + $0x4b]]
    %v912 = vstv %s910
    %v913 = vmul.f32 %v902, %v912
    %v914 = vmul.f32 %v903, %v912
    %v915 = vstv %s911
    %v916 = vmul.f32 %v908, %v915
    %v917 = vmul.f32 %v909, %v915
    %v918 = vadd.f32 %v913, %v916
    %v919 = vadd.f32 %v914, %v917
    %v920 = vsel %vm95, %v918, 0.0
    %v921 = vsel %vm96, %v919, 0.0
    %v922 = vadd.f32 %v895, %v920
    %v923 = vadd.f32 %v896, %v921
    %924 = vrot.lane.b32.xlu0 %v116, 125
    %v925 = vpop.permute.xlu0 %924
    %926 = vrot.lane.b32.xlu0 %v123, 125
    %v927 = vpop.permute.xlu0 %926
    %vm928 = vcmp.lt.s32.totalorder %v131, 125
    %v929 = vsel %vm928, %v925, %v927
    %v930 = vsel %vm928, %v927, %v925
    %931 = vrot.lane.b32.xlu0 %v152, 125
    %v932 = vpop.permute.xlu0 %931
    %933 = vrot.lane.b32.xlu0 %v159, 125
    %v934 = vpop.permute.xlu0 %933
    %v935 = vsel %vm928, %v932, %v934
    %v936 = vsel %vm928, %v934, %v932
    %s937 = sld [smem:[#allocation2 + $0x1b]]
    %s938 = sld [smem:[#allocation2 + $0x4c]]
    %v939 = vstv %s937
    %v940 = vmul.f32 %v929, %v939
    %v941 = vmul.f32 %v930, %v939
    %v942 = vstv %s938
    %v943 = vmul.f32 %v935, %v942
    %v944 = vmul.f32 %v936, %v942
    %v945 = vadd.f32 %v940, %v943
    %v946 = vadd.f32 %v941, %v944
    %v947 = vsel %vm97, %v945, 0.0
    %v948 = vsel %vm98, %v946, 0.0
    %v949 = vadd.f32 %v922, %v947
    %v950 = vadd.f32 %v923, %v948
    %951 = vrot.lane.b32.xlu0 %v116, 115
    %v952 = vpop.permute.xlu0 %951
    %953 = vrot.lane.b32.xlu0 %v123, 115
    %v954 = vpop.permute.xlu0 %953
    %vm955 = vcmp.lt.s32.totalorder %v131, 115
    %v956 = vsel %vm955, %v952, %v954
    %v957 = vsel %vm955, %v954, %v952
    %958 = vrot.lane.b32.xlu0 %v152, 115
    %v959 = vpop.permute.xlu0 %958
    %960 = vrot.lane.b32.xlu0 %v159, 115
    %v961 = vpop.permute.xlu0 %960
    %v962 = vsel %vm955, %v959, %v961
    %v963 = vsel %vm955, %v961, %v959
    %s964 = sld [smem:[#allocation2 + $0x1c]]
    %s965 = sld [smem:[#allocation2 + $0x4d]]
    %v966 = vstv %s964
    %v967 = vmul.f32 %v956, %v966
    %v968 = vmul.f32 %v957, %v966
    %v969 = vstv %s965
    %v970 = vmul.f32 %v962, %v969
    %v971 = vmul.f32 %v963, %v969
    %v972 = vadd.f32 %v967, %v970
    %v973 = vadd.f32 %v968, %v971
    %vm974 = vmand %vm81, %vm87
    %vm975 = vmand %vm82, %vm88
    %v976 = vsel %vm974, %v972, 0.0
    %v977 = vsel %vm975, %v973, 0.0
    %978 = vrot.lane.b32.xlu0 %v116, 114
    %v979 = vpop.permute.xlu0 %978
    %980 = vrot.lane.b32.xlu0 %v123, 114
    %v981 = vpop.permute.xlu0 %980
    %vm982 = vcmp.lt.s32.totalorder %v131, 114
    %v983 = vsel %vm982, %v979, %v981
    %v984 = vsel %vm982, %v981, %v979
    %985 = vrot.lane.b32.xlu0 %v152, 114
    %v986 = vpop.permute.xlu0 %985
    %987 = vrot.lane.b32.xlu0 %v159, 114
    %v988 = vpop.permute.xlu0 %987
    %v989 = vsel %vm982, %v986, %v988
    %v990 = vsel %vm982, %v988, %v986
    %s991 = sld [smem:[#allocation2 + $0x1d]]
    %s992 = sld [smem:[#allocation2 + $0x4e]]
    %v993 = vstv %s991
    %v994 = vmul.f32 %v983, %v993
    %v995 = vmul.f32 %v984, %v993
    %v996 = vstv %s992
    %v997 = vmul.f32 %v989, %v996
    %v998 = vmul.f32 %v990, %v996
    %v999 = vadd.f32 %v994, %v997
    %v1000 = vadd.f32 %v995, %v998
    %vm1001 = vmand %vm81, %vm89
    %vm1002 = vmand %vm82, %vm90
    %v1003 = vsel %vm1001, %v999, 0.0
    %v1004 = vsel %vm1002, %v1000, 0.0
    %v1005 = vadd.f32 %v976, %v1003
    %v1006 = vadd.f32 %v977, %v1004
    %1007 = vrot.lane.b32.xlu0 %v116, 113
    %v1008 = vpop.permute.xlu0 %1007
    %1009 = vrot.lane.b32.xlu0 %v123, 113
    %v1010 = vpop.permute.xlu0 %1009
    %vm1011 = vcmp.lt.s32.totalorder %v131, 113
    %v1012 = vsel %vm1011, %v1008, %v1010
    %v1013 = vsel %vm1011, %v1010, %v1008
    %1014 = vrot.lane.b32.xlu0 %v152, 113
    %v1015 = vpop.permute.xlu0 %1014
    %1016 = vrot.lane.b32.xlu0 %v159, 113
    %v1017 = vpop.permute.xlu0 %1016
    %v1018 = vsel %vm1011, %v1015, %v1017
    %v1019 = vsel %vm1011, %v1017, %v1015
    %s1020 = sld [smem:[#allocation2 + $0x1e]]
    %s1021 = sld [smem:[#allocation2 + $0x4f]]
    %v1022 = vstv %s1020
    %v1023 = vmul.f32 %v1012, %v1022
    %v1024 = vmul.f32 %v1013, %v1022
    %v1025 = vstv %s1021
    %v1026 = vmul.f32 %v1018, %v1025
    %v1027 = vmul.f32 %v1019, %v1025
    %v1028 = vadd.f32 %v1023, %v1026
    %v1029 = vadd.f32 %v1024, %v1027
    %vm1030 = vmand %vm81, %vm91
    %vm1031 = vmand %vm82, %vm92
    %v1032 = vsel %vm1030, %v1028, 0.0
    %v1033 = vsel %vm1031, %v1029, 0.0
    %v1034 = vadd.f32 %v1005, %v1032
    %v1035 = vadd.f32 %v1006, %v1033
    %1036 = vrot.lane.b32.xlu0 %v116, 112
    %v1037 = vpop.permute.xlu0 %1036
    %1038 = vrot.lane.b32.xlu0 %v123, 112
    %v1039 = vpop.permute.xlu0 %1038
    %vm1040 = vcmp.lt.s32.totalorder %v131, 112
    %v1041 = vsel %vm1040, %v1037, %v1039
    %v1042 = vsel %vm1040, %v1039, %v1037
    %1043 = vrot.lane.b32.xlu0 %v152, 112
    %v1044 = vpop.permute.xlu0 %1043
    %1045 = vrot.lane.b32.xlu0 %v159, 112
    %v1046 = vpop.permute.xlu0 %1045
    %v1047 = vsel %vm1040, %v1044, %v1046
    %v1048 = vsel %vm1040, %v1046, %v1044
    %s1049 = sld [smem:[#allocation2 + $0x1f]]
    %s1050 = sld [smem:[#allocation2 + $0x50]]
    %v1051 = vstv %s1049
    %v1052 = vmul.f32 %v1041, %v1051
    %v1053 = vmul.f32 %v1042, %v1051
    %v1054 = vstv %s1050
    %v1055 = vmul.f32 %v1047, %v1054
    %v1056 = vmul.f32 %v1048, %v1054
    %v1057 = vadd.f32 %v1052, %v1055
    %v1058 = vadd.f32 %v1053, %v1056
    %v1059 = vsel %vm81, %v1057, 0.0
    %v1060 = vsel %vm82, %v1058, 0.0
    %v1061 = vadd.f32 %v1034, %v1059
    %v1062 = vadd.f32 %v1035, %v1060
    %1063 = vrot.lane.b32.xlu0 %v116, 111
    %v1064 = vpop.permute.xlu0 %1063
    %1065 = vrot.lane.b32.xlu0 %v123, 111
    %v1066 = vpop.permute.xlu0 %1065
    %vm1067 = vcmp.lt.s32.totalorder %v131, 111
    %v1068 = vsel %vm1067, %v1064, %v1066
    %v1069 = vsel %vm1067, %v1066, %v1064
    %1070 = vrot.lane.b32.xlu0 %v152, 111
    %v1071 = vpop.permute.xlu0 %1070
    %1072 = vrot.lane.b32.xlu0 %v159, 111
    %v1073 = vpop.permute.xlu0 %1072
    %v1074 = vsel %vm1067, %v1071, %v1073
    %v1075 = vsel %vm1067, %v1073, %v1071
    %s1076 = sld [smem:[#allocation2 + $0x20]]
    %s1077 = sld [smem:[#allocation2 + $0x51]]
    %v1078 = vstv %s1076
    %v1079 = vmul.f32 %v1068, %v1078
    %v1080 = vmul.f32 %v1069, %v1078
    %v1081 = vstv %s1077
    %v1082 = vmul.f32 %v1074, %v1081
    %v1083 = vmul.f32 %v1075, %v1081
    %v1084 = vadd.f32 %v1079, %v1082
    %v1085 = vadd.f32 %v1080, %v1083
    %vm1086 = vmand %vm81, %vm93
    %vm1087 = vmand %vm82, %vm94
    %v1088 = vsel %vm1086, %v1084, 0.0
    %v1089 = vsel %vm1087, %v1085, 0.0
    %v1090 = vadd.f32 %v1061, %v1088
    %v1091 = vadd.f32 %v1062, %v1089
    %1092 = vrot.lane.b32.xlu0 %v116, 110
    %v1093 = vpop.permute.xlu0 %1092
    %1094 = vrot.lane.b32.xlu0 %v123, 110
    %v1095 = vpop.permute.xlu0 %1094
    %vm1096 = vcmp.lt.s32.totalorder %v131, 110
    %v1097 = vsel %vm1096, %v1093, %v1095
    %v1098 = vsel %vm1096, %v1095, %v1093
    %1099 = vrot.lane.b32.xlu0 %v152, 110
    %v1100 = vpop.permute.xlu0 %1099
    %1101 = vrot.lane.b32.xlu0 %v159, 110
    %v1102 = vpop.permute.xlu0 %1101
    %v1103 = vsel %vm1096, %v1100, %v1102
    %v1104 = vsel %vm1096, %v1102, %v1100
    %s1105 = sld [smem:[#allocation2 + $0x21]]
    %s1106 = sld [smem:[#allocation2 + $0x52]]
    %v1107 = vstv %s1105
    %v1108 = vmul.f32 %v1097, %v1107
    %v1109 = vmul.f32 %v1098, %v1107
    %v1110 = vstv %s1106
    %v1111 = vmul.f32 %v1103, %v1110
    %v1112 = vmul.f32 %v1104, %v1110
    %v1113 = vadd.f32 %v1108, %v1111
    %v1114 = vadd.f32 %v1109, %v1112
    %vm1115 = vmand %vm81, %vm95
    %vm1116 = vmand %vm82, %vm96
    %v1117 = vsel %vm1115, %v1113, 0.0
    %v1118 = vsel %vm1116, %v1114, 0.0
    %v1119 = vadd.f32 %v1090, %v1117
    %v1120 = vadd.f32 %v1091, %v1118
    %1121 = vrot.lane.b32.xlu0 %v116, 109
    %v1122 = vpop.permute.xlu0 %1121
    %1123 = vrot.lane.b32.xlu0 %v123, 109
    %v1124 = vpop.permute.xlu0 %1123
    %vm1125 = vcmp.lt.s32.totalorder %v131, 109
    %v1126 = vsel %vm1125, %v1122, %v1124
    %v1127 = vsel %vm1125, %v1124, %v1122
    %1128 = vrot.lane.b32.xlu0 %v152, 109
    %v1129 = vpop.permute.xlu0 %1128
    %1130 = vrot.lane.b32.xlu0 %v159, 109
    %v1131 = vpop.permute.xlu0 %1130
    %v1132 = vsel %vm1125, %v1129, %v1131
    %v1133 = vsel %vm1125, %v1131, %v1129
    %s1134 = sld [smem:[#allocation2 + $0x22]]
    %s1135 = sld [smem:[#allocation2 + $0x53]]
    %v1136 = vstv %s1134
    %v1137 = vmul.f32 %v1126, %v1136
    %v1138 = vmul.f32 %v1127, %v1136
    %v1139 = vstv %s1135
    %v1140 = vmul.f32 %v1132, %v1139
    %v1141 = vmul.f32 %v1133, %v1139
    %v1142 = vadd.f32 %v1137, %v1140
    %v1143 = vadd.f32 %v1138, %v1141
    %vm1144 = vmand %vm81, %vm97
    %vm1145 = vmand %vm82, %vm98
    %v1146 = vsel %vm1144, %v1142, 0.0
    %v1147 = vsel %vm1145, %v1143, 0.0
    %v1148 = vadd.f32 %v1119, %v1146
    %v1149 = vadd.f32 %v1120, %v1147
    %v1150 = vadd.f32 %v352, %v1148
    %v1151 = vadd.f32 %v353, %v1149
    %1152 = vrot.lane.b32.xlu0 %v116, 99
    %v1153 = vpop.permute.xlu0 %1152
    %1154 = vrot.lane.b32.xlu0 %v123, 99
    %v1155 = vpop.permute.xlu0 %1154
    %vm1156 = vcmp.lt.s32.totalorder %v131, 99
    %v1157 = vsel %vm1156, %v1153, %v1155
    %v1158 = vsel %vm1156, %v1155, %v1153
    %1159 = vrot.lane.b32.xlu0 %v152, 99
    %v1160 = vpop.permute.xlu0 %1159
    %1161 = vrot.lane.b32.xlu0 %v159, 99
    %v1162 = vpop.permute.xlu0 %1161
    %v1163 = vsel %vm1156, %v1160, %v1162
    %v1164 = vsel %vm1156, %v1162, %v1160
    %s1165 = sld [smem:[#allocation2 + $0x23]]
    %s1166 = sld [smem:[#allocation2 + $0x54]]
    %v1167 = vstv %s1165
    %v1168 = vmul.f32 %v1157, %v1167
    %v1169 = vmul.f32 %v1158, %v1167
    %v1170 = vstv %s1166
    %v1171 = vmul.f32 %v1163, %v1170
    %v1172 = vmul.f32 %v1164, %v1170
    %v1173 = vadd.f32 %v1168, %v1171
    %v1174 = vadd.f32 %v1169, %v1172
    %vm1175 = vmand %vm83, %vm87
    %vm1176 = vmand %vm84, %vm88
    %v1177 = vsel %vm1175, %v1173, 0.0
    %v1178 = vsel %vm1176, %v1174, 0.0
    %1179 = vrot.lane.b32.xlu0 %v116, 98
    %v1180 = vpop.permute.xlu0 %1179
    %1181 = vrot.lane.b32.xlu0 %v123, 98
    %v1182 = vpop.permute.xlu0 %1181
    %vm1183 = vcmp.lt.s32.totalorder %v131, 98
    %v1184 = vsel %vm1183, %v1180, %v1182
    %v1185 = vsel %vm1183, %v1182, %v1180
    %1186 = vrot.lane.b32.xlu0 %v152, 98
    %v1187 = vpop.permute.xlu0 %1186
    %1188 = vrot.lane.b32.xlu0 %v159, 98
    %v1189 = vpop.permute.xlu0 %1188
    %v1190 = vsel %vm1183, %v1187, %v1189
    %v1191 = vsel %vm1183, %v1189, %v1187
    %s1192 = sld [smem:[#allocation2 + $0x24]]
    %s1193 = sld [smem:[#allocation2 + $0x55]]
    %v1194 = vstv %s1192
    %v1195 = vmul.f32 %v1184, %v1194
    %v1196 = vmul.f32 %v1185, %v1194
    %v1197 = vstv %s1193
    %v1198 = vmul.f32 %v1190, %v1197
    %v1199 = vmul.f32 %v1191, %v1197
    %v1200 = vadd.f32 %v1195, %v1198
    %v1201 = vadd.f32 %v1196, %v1199
    %vm1202 = vmand %vm83, %vm89
    %vm1203 = vmand %vm84, %vm90
    %v1204 = vsel %vm1202, %v1200, 0.0
    %v1205 = vsel %vm1203, %v1201, 0.0
    %v1206 = vadd.f32 %v1177, %v1204
    %v1207 = vadd.f32 %v1178, %v1205
    %1208 = vrot.lane.b32.xlu0 %v116, 97
    %v1209 = vpop.permute.xlu0 %1208
    %1210 = vrot.lane.b32.xlu0 %v123, 97
    %v1211 = vpop.permute.xlu0 %1210
    %vm1212 = vcmp.lt.s32.totalorder %v131, 97
    %v1213 = vsel %vm1212, %v1209, %v1211
    %v1214 = vsel %vm1212, %v1211, %v1209
    %1215 = vrot.lane.b32.xlu0 %v152, 97
    %v1216 = vpop.permute.xlu0 %1215
    %1217 = vrot.lane.b32.xlu0 %v159, 97
    %v1218 = vpop.permute.xlu0 %1217
    %v1219 = vsel %vm1212, %v1216, %v1218
    %v1220 = vsel %vm1212, %v1218, %v1216
    %s1221 = sld [smem:[#allocation2 + $0x25]]
    %s1222 = sld [smem:[#allocation2 + $0x56]]
    %v1223 = vstv %s1221
    %v1224 = vmul.f32 %v1213, %v1223
    %v1225 = vmul.f32 %v1214, %v1223
    %v1226 = vstv %s1222
    %v1227 = vmul.f32 %v1219, %v1226
    %v1228 = vmul.f32 %v1220, %v1226
    %v1229 = vadd.f32 %v1224, %v1227
    %v1230 = vadd.f32 %v1225, %v1228
    %vm1231 = vmand %vm83, %vm91
    %vm1232 = vmand %vm84, %vm92
    %v1233 = vsel %vm1231, %v1229, 0.0
    %v1234 = vsel %vm1232, %v1230, 0.0
    %v1235 = vadd.f32 %v1206, %v1233
    %v1236 = vadd.f32 %v1207, %v1234
    %1237 = vrot.lane.b32.xlu0 %v116, 96
    %v1238 = vpop.permute.xlu0 %1237
    %1239 = vrot.lane.b32.xlu0 %v123, 96
    %v1240 = vpop.permute.xlu0 %1239
    %vm1241 = vcmp.lt.s32.totalorder %v131, 96
    %v1242 = vsel %vm1241, %v1238, %v1240
    %v1243 = vsel %vm1241, %v1240, %v1238
    %1244 = vrot.lane.b32.xlu0 %v152, 96
    %v1245 = vpop.permute.xlu0 %1244
    %1246 = vrot.lane.b32.xlu0 %v159, 96
    %v1247 = vpop.permute.xlu0 %1246
    %v1248 = vsel %vm1241, %v1245, %v1247
    %v1249 = vsel %vm1241, %v1247, %v1245
    %s1250 = sld [smem:[#allocation2 + $0x26]]
    %s1251 = sld [smem:[#allocation2 + $0x57]]
    %v1252 = vstv %s1250
    %v1253 = vmul.f32 %v1242, %v1252
    %v1254 = vmul.f32 %v1243, %v1252
    %v1255 = vstv %s1251
    %v1256 = vmul.f32 %v1248, %v1255
    %v1257 = vmul.f32 %v1249, %v1255
    %v1258 = vadd.f32 %v1253, %v1256
    %v1259 = vadd.f32 %v1254, %v1257
    %v1260 = vsel %vm83, %v1258, 0.0
    %v1261 = vsel %vm84, %v1259, 0.0
    %v1262 = vadd.f32 %v1235, %v1260
    %v1263 = vadd.f32 %v1236, %v1261
    %1264 = vrot.lane.b32.xlu0 %v116, 95
    %v1265 = vpop.permute.xlu0 %1264
    %1266 = vrot.lane.b32.xlu0 %v123, 95
    %v1267 = vpop.permute.xlu0 %1266
    %vm1268 = vcmp.lt.s32.totalorder %v131, 95
    %v1269 = vsel %vm1268, %v1265, %v1267
    %v1270 = vsel %vm1268, %v1267, %v1265
    %1271 = vrot.lane.b32.xlu0 %v152, 95
    %v1272 = vpop.permute.xlu0 %1271
    %1273 = vrot.lane.b32.xlu0 %v159, 95
    %v1274 = vpop.permute.xlu0 %1273
    %v1275 = vsel %vm1268, %v1272, %v1274
    %v1276 = vsel %vm1268, %v1274, %v1272
    %s1277 = sld [smem:[#allocation2 + $0x27]]
    %s1278 = sld [smem:[#allocation2 + $0x58]]
    %v1279 = vstv %s1277
    %v1280 = vmul.f32 %v1269, %v1279
    %v1281 = vmul.f32 %v1270, %v1279
    %v1282 = vstv %s1278
    %v1283 = vmul.f32 %v1275, %v1282
    %v1284 = vmul.f32 %v1276, %v1282
    %v1285 = vadd.f32 %v1280, %v1283
    %v1286 = vadd.f32 %v1281, %v1284
    %vm1287 = vmand %vm83, %vm93
    %vm1288 = vmand %vm84, %vm94
    %v1289 = vsel %vm1287, %v1285, 0.0
    %v1290 = vsel %vm1288, %v1286, 0.0
    %v1291 = vadd.f32 %v1262, %v1289
    %v1292 = vadd.f32 %v1263, %v1290
    %1293 = vrot.lane.b32.xlu0 %v116, 94
    %v1294 = vpop.permute.xlu0 %1293
    %1295 = vrot.lane.b32.xlu0 %v123, 94
    %v1296 = vpop.permute.xlu0 %1295
    %vm1297 = vcmp.lt.s32.totalorder %v131, 94
    %v1298 = vsel %vm1297, %v1294, %v1296
    %v1299 = vsel %vm1297, %v1296, %v1294
    %1300 = vrot.lane.b32.xlu0 %v152, 94
    %v1301 = vpop.permute.xlu0 %1300
    %1302 = vrot.lane.b32.xlu0 %v159, 94
    %v1303 = vpop.permute.xlu0 %1302
    %v1304 = vsel %vm1297, %v1301, %v1303
    %v1305 = vsel %vm1297, %v1303, %v1301
    %s1306 = sld [smem:[#allocation2 + $0x28]]
    %s1307 = sld [smem:[#allocation2 + $0x59]]
    %v1308 = vstv %s1306
    %v1309 = vmul.f32 %v1298, %v1308
    %v1310 = vmul.f32 %v1299, %v1308
    %v1311 = vstv %s1307
    %v1312 = vmul.f32 %v1304, %v1311
    %v1313 = vmul.f32 %v1305, %v1311
    %v1314 = vadd.f32 %v1309, %v1312
    %v1315 = vadd.f32 %v1310, %v1313
    %vm1316 = vmand %vm83, %vm95
    %vm1317 = vmand %vm84, %vm96
    %v1318 = vsel %vm1316, %v1314, 0.0
    %v1319 = vsel %vm1317, %v1315, 0.0
    %v1320 = vadd.f32 %v1291, %v1318
    %v1321 = vadd.f32 %v1292, %v1319
    %1322 = vrot.lane.b32.xlu0 %v116, 93
    %v1323 = vpop.permute.xlu0 %1322
    %1324 = vrot.lane.b32.xlu0 %v123, 93
    %v1325 = vpop.permute.xlu0 %1324
    %vm1326 = vcmp.lt.s32.totalorder %v131, 93
    %v1327 = vsel %vm1326, %v1323, %v1325
    %v1328 = vsel %vm1326, %v1325, %v1323
    %1329 = vrot.lane.b32.xlu0 %v152, 93
    %v1330 = vpop.permute.xlu0 %1329
    %1331 = vrot.lane.b32.xlu0 %v159, 93
    %v1332 = vpop.permute.xlu0 %1331
    %v1333 = vsel %vm1326, %v1330, %v1332
    %v1334 = vsel %vm1326, %v1332, %v1330
    %s1335 = sld [smem:[#allocation2 + $0x29]]
    %s1336 = sld [smem:[#allocation2 + $0x5a]]
    %v1337 = vstv %s1335
    %v1338 = vmul.f32 %v1327, %v1337
    %v1339 = vmul.f32 %v1328, %v1337
    %v1340 = vstv %s1336
    %v1341 = vmul.f32 %v1333, %v1340
    %v1342 = vmul.f32 %v1334, %v1340
    %v1343 = vadd.f32 %v1338, %v1341
    %v1344 = vadd.f32 %v1339, %v1342
    %vm1345 = vmand %vm83, %vm97
    %vm1346 = vmand %vm84, %vm98
    %v1347 = vsel %vm1345, %v1343, 0.0
    %v1348 = vsel %vm1346, %v1344, 0.0
    %v1349 = vadd.f32 %v1320, %v1347
    %v1350 = vadd.f32 %v1321, %v1348
    %v1351 = vadd.f32 %v551, %v1349
    %v1352 = vadd.f32 %v552, %v1350
    %1353 = vrot.lane.b32.xlu0 %v116, 83
    %v1354 = vpop.permute.xlu0 %1353
    %1355 = vrot.lane.b32.xlu0 %v123, 83
    %v1356 = vpop.permute.xlu0 %1355
    %vm1357 = vcmp.lt.s32.totalorder %v131, 83
    %v1358 = vsel %vm1357, %v1354, %v1356
    %v1359 = vsel %vm1357, %v1356, %v1354
    %1360 = vrot.lane.b32.xlu0 %v152, 83
    %v1361 = vpop.permute.xlu0 %1360
    %1362 = vrot.lane.b32.xlu0 %v159, 83
    %v1363 = vpop.permute.xlu0 %1362
    %v1364 = vsel %vm1357, %v1361, %v1363
    %v1365 = vsel %vm1357, %v1363, %v1361
    %s1366 = sld [smem:[#allocation2 + $0x2a]]
    %s1367 = sld [smem:[#allocation2 + $0x5b]]
    %v1368 = vstv %s1366
    %v1369 = vmul.f32 %v1358, %v1368
    %v1370 = vmul.f32 %v1359, %v1368
    %v1371 = vstv %s1367
    %v1372 = vmul.f32 %v1364, %v1371
    %v1373 = vmul.f32 %v1365, %v1371
    %v1374 = vadd.f32 %v1369, %v1372
    %v1375 = vadd.f32 %v1370, %v1373
    %vm1376 = vmand %vm85, %vm87
    %vm1377 = vmand %vm86, %vm88
    %v1378 = vsel %vm1376, %v1374, 0.0
    %v1379 = vsel %vm1377, %v1375, 0.0
    %1380 = vrot.lane.b32.xlu0 %v116, 82
    %v1381 = vpop.permute.xlu0 %1380
    %1382 = vrot.lane.b32.xlu0 %v123, 82
    %v1383 = vpop.permute.xlu0 %1382
    %vm1384 = vcmp.lt.s32.totalorder %v131, 82
    %v1385 = vsel %vm1384, %v1381, %v1383
    %v1386 = vsel %vm1384, %v1383, %v1381
    %1387 = vrot.lane.b32.xlu0 %v152, 82
    %v1388 = vpop.permute.xlu0 %1387
    %1389 = vrot.lane.b32.xlu0 %v159, 82
    %v1390 = vpop.permute.xlu0 %1389
    %v1391 = vsel %vm1384, %v1388, %v1390
    %v1392 = vsel %vm1384, %v1390, %v1388
    %s1393 = sld [smem:[#allocation2 + $0x2b]]
    %s1394 = sld [smem:[#allocation2 + $0x5c]]
    %v1395 = vstv %s1393
    %v1396 = vmul.f32 %v1385, %v1395
    %v1397 = vmul.f32 %v1386, %v1395
    %v1398 = vstv %s1394
    %v1399 = vmul.f32 %v1391, %v1398
    %v1400 = vmul.f32 %v1392, %v1398
    %v1401 = vadd.f32 %v1396, %v1399
    %v1402 = vadd.f32 %v1397, %v1400
    %vm1403 = vmand %vm85, %vm89
    %vm1404 = vmand %vm86, %vm90
    %v1405 = vsel %vm1403, %v1401, 0.0
    %v1406 = vsel %vm1404, %v1402, 0.0
    %v1407 = vadd.f32 %v1378, %v1405
    %v1408 = vadd.f32 %v1379, %v1406
    %1409 = vrot.lane.b32.xlu0 %v116, 81
    %v1410 = vpop.permute.xlu0 %1409
    %1411 = vrot.lane.b32.xlu0 %v123, 81
    %v1412 = vpop.permute.xlu0 %1411
    %vm1413 = vcmp.lt.s32.totalorder %v131, 81
    %v1414 = vsel %vm1413, %v1410, %v1412
    %v1415 = vsel %vm1413, %v1412, %v1410
    %1416 = vrot.lane.b32.xlu0 %v152, 81
    %v1417 = vpop.permute.xlu0 %1416
    %1418 = vrot.lane.b32.xlu0 %v159, 81
    %v1419 = vpop.permute.xlu0 %1418
    %v1420 = vsel %vm1413, %v1417, %v1419
    %v1421 = vsel %vm1413, %v1419, %v1417
    %s1422 = sld [smem:[#allocation2 + $0x2c]]
    %s1423 = sld [smem:[#allocation2 + $0x5d]]
    %v1424 = vstv %s1422
    %v1425 = vmul.f32 %v1414, %v1424
    %v1426 = vmul.f32 %v1415, %v1424
    %v1427 = vstv %s1423
    %v1428 = vmul.f32 %v1420, %v1427
    %v1429 = vmul.f32 %v1421, %v1427
    %v1430 = vadd.f32 %v1425, %v1428
    %v1431 = vadd.f32 %v1426, %v1429
    %vm1432 = vmand %vm85, %vm91
    %vm1433 = vmand %vm86, %vm92
    %v1434 = vsel %vm1432, %v1430, 0.0
    %v1435 = vsel %vm1433, %v1431, 0.0
    %v1436 = vadd.f32 %v1407, %v1434
    %v1437 = vadd.f32 %v1408, %v1435
    %1438 = vrot.lane.b32.xlu0 %v116, 80
    %v1439 = vpop.permute.xlu0 %1438
    %1440 = vrot.lane.b32.xlu0 %v123, 80
    %v1441 = vpop.permute.xlu0 %1440
    %vm1442 = vcmp.lt.s32.totalorder %v131, 80
    %v1443 = vsel %vm1442, %v1439, %v1441
    %v1444 = vsel %vm1442, %v1441, %v1439
    %1445 = vrot.lane.b32.xlu0 %v152, 80
    %v1446 = vpop.permute.xlu0 %1445
    %1447 = vrot.lane.b32.xlu0 %v159, 80
    %v1448 = vpop.permute.xlu0 %1447
    %v1449 = vsel %vm1442, %v1446, %v1448
    %v1450 = vsel %vm1442, %v1448, %v1446
    %s1451 = sld [smem:[#allocation2 + $0x2d]]
    %s1452 = sld [smem:[#allocation2 + $0x5e]]
    %v1453 = vstv %s1451
    %v1454 = vmul.f32 %v1443, %v1453
    %v1455 = vmul.f32 %v1444, %v1453
    %v1456 = vstv %s1452
    %v1457 = vmul.f32 %v1449, %v1456
    %v1458 = vmul.f32 %v1450, %v1456
    %v1459 = vadd.f32 %v1454, %v1457
    %v1460 = vadd.f32 %v1455, %v1458
    %v1461 = vsel %vm85, %v1459, 0.0
    %v1462 = vsel %vm86, %v1460, 0.0
    %v1463 = vadd.f32 %v1436, %v1461
    %v1464 = vadd.f32 %v1437, %v1462
    %1465 = vrot.lane.b32.xlu0 %v116, 79
    %v1466 = vpop.permute.xlu0 %1465
    %1467 = vrot.lane.b32.xlu0 %v123, 79
    %v1468 = vpop.permute.xlu0 %1467
    %vm1469 = vcmp.lt.s32.totalorder %v131, 79
    %v1470 = vsel %vm1469, %v1466, %v1468
    %v1471 = vsel %vm1469, %v1468, %v1466
    %1472 = vrot.lane.b32.xlu0 %v152, 79
    %v1473 = vpop.permute.xlu0 %1472
    %1474 = vrot.lane.b32.xlu0 %v159, 79
    %v1475 = vpop.permute.xlu0 %1474
    %v1476 = vsel %vm1469, %v1473, %v1475
    %v1477 = vsel %vm1469, %v1475, %v1473
    %s1478 = sld [smem:[#allocation2 + $0x2e]]
    %s1479 = sld [smem:[#allocation2 + $0x5f]]
    %v1480 = vstv %s1478
    %v1481 = vmul.f32 %v1470, %v1480
    %v1482 = vmul.f32 %v1471, %v1480
    %v1483 = vstv %s1479
    %v1484 = vmul.f32 %v1476, %v1483
    %v1485 = vmul.f32 %v1477, %v1483
    %v1486 = vadd.f32 %v1481, %v1484
    %v1487 = vadd.f32 %v1482, %v1485
    %vm1488 = vmand %vm85, %vm93
    %vm1489 = vmand %vm86, %vm94
    %v1490 = vsel %vm1488, %v1486, 0.0
    %v1491 = vsel %vm1489, %v1487, 0.0
    %v1492 = vadd.f32 %v1463, %v1490
    %v1493 = vadd.f32 %v1464, %v1491
    %1494 = vrot.lane.b32.xlu0 %v116, 78
    %v1495 = vpop.permute.xlu0 %1494
    %1496 = vrot.lane.b32.xlu0 %v123, 78
    %v1497 = vpop.permute.xlu0 %1496
    %vm1498 = vcmp.lt.s32.totalorder %v131, 78
    %v1499 = vsel %vm1498, %v1495, %v1497
    %v1500 = vsel %vm1498, %v1497, %v1495
    %1501 = vrot.lane.b32.xlu0 %v152, 78
    %v1502 = vpop.permute.xlu0 %1501
    %1503 = vrot.lane.b32.xlu0 %v159, 78
    %v1504 = vpop.permute.xlu0 %1503
    %v1505 = vsel %vm1498, %v1502, %v1504
    %v1506 = vsel %vm1498, %v1504, %v1502
    %s1507 = sld [smem:[#allocation2 + $0x2f]]
    %s1508 = sld [smem:[#allocation2 + $0x60]]
    %v1509 = vstv %s1507
    %v1510 = vmul.f32 %v1499, %v1509
    %v1511 = vmul.f32 %v1500, %v1509
    %v1512 = vstv %s1508
    %v1513 = vmul.f32 %v1505, %v1512
    %v1514 = vmul.f32 %v1506, %v1512
    %v1515 = vadd.f32 %v1510, %v1513
    %v1516 = vadd.f32 %v1511, %v1514
    %vm1517 = vmand %vm85, %vm95
    %vm1518 = vmand %vm86, %vm96
    %v1519 = vsel %vm1517, %v1515, 0.0
    %v1520 = vsel %vm1518, %v1516, 0.0
    %v1521 = vadd.f32 %v1492, %v1519
    %v1522 = vadd.f32 %v1493, %v1520
    %1523 = vrot.lane.b32.xlu0 %v116, 77
    %v1524 = vpop.permute.xlu0 %1523
    %1525 = vrot.lane.b32.xlu0 %v123, 77
    %v1526 = vpop.permute.xlu0 %1525
    %vm1527 = vcmp.lt.s32.totalorder %v131, 77
    %v1528 = vsel %vm1527, %v1524, %v1526
    %v1529 = vsel %vm1527, %v1526, %v1524
    %1530 = vrot.lane.b32.xlu0 %v152, 77
    %v1531 = vpop.permute.xlu0 %1530
    %1532 = vrot.lane.b32.xlu0 %v159, 77
    %v1533 = vpop.permute.xlu0 %1532
    %v1534 = vsel %vm1527, %v1531, %v1533
    %v1535 = vsel %vm1527, %v1533, %v1531
    %s1536 = sld [smem:[#allocation2 + $0x30]]
    %s1537 = sld [smem:[#allocation2 + $0x61]]
    %v1538 = vstv %s1536
    %v1539 = vmul.f32 %v1528, %v1538
    %v1540 = vmul.f32 %v1529, %v1538
    %v1541 = vstv %s1537
    %v1542 = vmul.f32 %v1534, %v1541
    %v1543 = vmul.f32 %v1535, %v1541
    %v1544 = vadd.f32 %v1539, %v1542
    %v1545 = vadd.f32 %v1540, %v1543
    %vm1546 = vmand %vm85, %vm97
    %vm1547 = vmand %vm86, %vm98
    %v1548 = vsel %vm1546, %v1544, 0.0
    %v1549 = vsel %vm1547, %v1545, 0.0
    %v1550 = vadd.f32 %v1521, %v1548
    %v1551 = vadd.f32 %v1522, %v1549
    %v1552 = vadd.f32 %v750, %v1550
    %v1553 = vadd.f32 %v751, %v1551
    %v1554 = vadd.f32 %v1150, %v1351
    %v1555 = vadd.f32 %v1151, %v1352
    %v1556 = vadd.f32 %v1552, %v949
    %v1557 = vadd.f32 %v1553, %v950
    %v1558 = vadd.f32 %v1554, %v1556
    %v1559 = vadd.f32 %v1555, %v1557
    %v1560 = vxor.u32 %v1558, 2147483648
    %v1561 = vxor.u32 %v1559, 2147483648
    %v1562 = vmul.f32 %v1560, 1.442695
    %v1563 = vpow.pop %v1562
    %v1564 = vmul.f32 %v1561, 1.442695
    %v1565 = vpow.pop %v1564
    %v1566 = vadd.f32 %v1563, 1.0
    %v1567 = vadd.f32 %v1565, 1.0
    %v1568 = vrcp.pop %v1566
    %v1569 = vmul.f32 1.0, %v1568
    %v1570 = vrcp.pop %v1567
    %v1571 = vmul.f32 1.0, %v1570
    %v1574 = vcombine.low %v1569, %v1571
    %v1576 = vunpack.c.l.s4 1966171168
    %v1577 = vunpack.c.0.s8 %v1576
    %v1578 = vlaneseq
    %v1579 = vshrl.u32 %v1578, 7
    %v1580 = vsub.s32 %v1577, %v1579
    %v1581 = vrot.slane %v1574, %v1580
    %v1582 = vcombine.high %v1581, %v1581
    %v1584 = vunpack.c.l.s4 1966171168
    %v1585 = vunpack.c.0.s8 %v1584
    %v1586 = vlaneseq
    %v1587 = vshrl.u32 %v1586, 7
    %v1588 = vsub.s32 %v1585, %v1587
    %v1589 = vrot.slane %v1581, %v1588
    %v1591 = vunpack.c.l.s4 1966171168
    %v1592 = vunpack.c.0.s8 %v1591
    %v1593 = vlaneseq
    %v1594 = vshrl.u32 %v1593, 7
    %v1595 = vsub.s32 %v1592, %v1594
    %v1596 = vrot.slane %v1582, %v1595
    %v1599 = vlaneseq
    %vm1600 = vcmp.ge.s32.totalorder %v1599, 0
    %vm1601 = vcmp.lt.s32.totalorder %v1599, 256
    %vm1602 = vmand %vm1600, %vm1601
    %1603 = vst.msk [vmem:[%s4] sm:$0x3] %vm1602, %v1589
    %1604 = vst.msk [vmem:[%s4 + $0x2] sm:$0x3] %vm1602, %v1596
    // Predicated region
    $region22: #{spatial_attention.1} parent=1 // pred_check
      _
    $region23: #{spatial_attention.1} parent=1 // pred_check_branch
      %1606 = sbr.rel (0) target = $region25
    $region24: #{spatial_attention.1} parent=1 // pred_region
      _
    $region25: #{spatial_attention.1} parent=1 // pred_fallthru
      _
    // Predicated region
    $region26: #{spatial_attention.1} parent=1 // pred_check
      _
    $region27: #{spatial_attention.1} parent=1 // pred_check_branch
      %1608 = sbr.rel (0) target = $region29
    $region28: #{spatial_attention.1} parent=1 // pred_region
      _
    $region29: #{spatial_attention.1} parent=1 // pred_fallthru
      _
    %1609 = vsyncpa [#allocation3], 1

</llo_original>
